<compile_context>
chip_gen: v7x
topology: tpu7x:2x2x1
jax: 0.10.0
libtpu: 0.0.40
codegen_flags: <defaults>
</compile_context>

<pallas_src>
import math
from functools import partial

import jax
import jax.numpy as jnp
from jax.experimental import pallas as pl
from jax.experimental.pallas import tpu as pltpu

LN_EPS = 1e-5
NEG_INF = -1e30  # exp(NEG_INF - max) == 0 exactly in f32, same effect as -inf masking


# ----------------------------- shared helpers -----------------------------
def _layernorm(x, gamma, beta):
    mu = jnp.mean(x, axis=-1, keepdims=True)
    var = jnp.mean(jnp.square(x - mu), axis=-1, keepdims=True)
    return (x - mu) * jax.lax.rsqrt(var + LN_EPS) * gamma + beta


def _erf_f32(x):
    # Abramowitz & Stegun 7.1.26 (|err| < 1.5e-7) built from exp only, so it
    # always lowers on Mosaic (lax.erf may not).
    a1, a2, a3, a4, a5 = 0.254829592, -0.284496736, 1.421413741, -1.453152027, 1.061405429
    p = 0.3275911
    sgn = jnp.where(x >= 0.0, 1.0, -1.0)
    ax = jnp.abs(x)
    t = 1.0 / (1.0 + p * ax)
    poly = ((((a5 * t + a4) * t + a3) * t + a2) * t + a1) * t
    return sgn * (1.0 - poly * jnp.exp(-ax * ax))


def _gelu_exact(x):
    return 0.5 * x * (1.0 + _erf_f32(x * (1.0 / math.sqrt(2.0))))


def _rope_tables(T, D):
    """cos/sin tables (T, D). sin_signed folds the rotate-half sign into the table
    so the kernel only needs concat([y2, y1]) * sin_signed."""
    half = D // 2
    inv_freq = 1.0 / (10000.0 ** (jnp.arange(half, dtype=jnp.float32) * 2.0 / D))
    ang = jnp.arange(T, dtype=jnp.float32)[:, None] * inv_freq[None, :]      # (T, half)
    cos = jnp.concatenate([jnp.cos(ang), jnp.cos(ang)], axis=-1)             # (T, D)
    sin = jnp.concatenate([jnp.sin(ang), jnp.sin(ang)], axis=-1)             # (T, D)
    sin_signed = jnp.concatenate([-jnp.sin(ang), jnp.sin(ang)], axis=-1)     # (T, D)
    return cos, sin, sin_signed


def _local_mask_bias(T, radius):
    """Additive bias reproducing local_mask + PyTorch bool-mask SDPA semantics
    (literal translation of the PyTorch loop, incl. the index clamping).
    NOTE: rows that end up fully banned (window >= ~T/2) get a uniform softmax
    here, whereas PyTorch SDPA would produce NaN rows; not hit at this config."""
    i = jnp.arange(T)[:, None]
    j = jnp.arange(T)[None, :]
    banned = jnp.zeros((T, T), dtype=bool)
    for d in range(-radius, radius + 1):
        banned = banned | (j == jnp.clip(i + d, 0, T - 1))
    banned = banned | (i == j)
    allowed = ~banned                                   # True == attend (SDPA bool mask)
    return jnp.where(allowed, 0.0, NEG_INF).astype(jnp.float32)


def _chunk_bias(T, radius, seqs_per_chunk):
    """(R, R) additive bias for seqs_per_chunk sequences flattened into rows:
    per-sequence anti-local band on the block diagonal, cross-sequence banned."""
    per_seq = _local_mask_bias(T, radius)
    R = seqs_per_chunk * T
    bias = jnp.full((R, R), NEG_INF, dtype=jnp.float32)
    for s in range(seqs_per_chunk):
        bias = bias.at[s * T:(s + 1) * T, s * T:(s + 1) * T].set(per_seq)
    return bias


# ------------------------------ fused kernel --------------------------------
def _lgblock_kernel(x_ref, ln_g_ref, ln_b_ref, cos_ref, sin_ref, bias_ref,
                    wqkv_ref, bqkv_ref, wo_ref, bo_ref,
                    ff_ln_g_ref, ff_ln_b_ref, w1_ref, b1_ref, w2_ref, b2_ref,
                    o_ref, *, n_heads):
    x = x_ref[0]                                        # (R, D) f32, R = seqs*T
    R, D = x.shape
    dh = D // n_heads
    scale = 1.0 / math.sqrt(dh)
    half = D // 2
    bf16 = jnp.bfloat16

    # --- LN + RoPE (rotate-half via lane slice+concat; sign lives in sin table) ---
    y = _layernorm(x, ln_g_ref[...], ln_b_ref[...])
    rolled = jnp.concatenate([y[:, half:], y[:, :half]], axis=-1)   # [y2, y1]
    y = y * cos_ref[...] + rolled * sin_ref[...]

    # --- fused QKV projection: one (R,D)x(D,3D) bf16 MXU op, f32 accumulate ---
    qkv = jnp.dot(y.astype(bf16), wqkv_ref[...],
                  preferred_element_type=jnp.float32) + bqkv_ref[...]
    q = (qkv[:, :D] * scale).astype(bf16)               # fold 1/sqrt(dh) into q
    k = qkv[:, D:2 * D].astype(bf16)
    v = qkv[:, 2 * D:].astype(bf16)

    # --- per-head masked softmax attention; head-merge + ONE fused out_proj ---
    bias = bias_ref[...]                                # grid-invariant, precomputed
    heads_out = []
    for h in range(n_heads):                            # static unroll, n_heads small
        sl = slice(h * dh, (h + 1) * dh)
        s = jax.lax.dot_general(q[:, sl], k[:, sl], (((1,), (1,)), ((), ())),
                                preferred_element_type=jnp.float32)      # (R, R)
        s = s + bias
        m = jnp.max(s, axis=-1, keepdims=True)
        p = jnp.exp(s - m)
        p = p / jnp.sum(p, axis=-1, keepdims=True)
        heads_out.append(jnp.dot(p.astype(bf16), v[:, sl],
                                 preferred_element_type=jnp.float32))    # (R, dh)
    o_all = jnp.concatenate(heads_out, axis=-1)                          # (R, D)
    attn = jnp.dot(o_all.astype(bf16), wo_ref[...],
                   preferred_element_type=jnp.float32) + bo_ref[...]

    x1 = x + attn                                       # residual 1

    # --- x1 + ff(ln(x1)), ff = [LayerNorm, Linear(D,4D), GELU(exact), Linear(4D,D)] ---
    z = _layernorm(x1, ln_g_ref[...], ln_b_ref[...])        # self.ln
    z = _layernorm(z, ff_ln_g_ref[...], ff_ln_b_ref[...])   # ff[0] LayerNorm
    h1 = jnp.dot(z.astype(bf16), w1_ref[...],
                 preferred_element_type=jnp.float32) + b1_ref[...]
    h1 = _gelu_exact(h1)
    z2 = jnp.dot(h1.astype(bf16), w2_ref[...],
                 preferred_element_type=jnp.float32) + b2_ref[...]
    o_ref[0] = x1 + z2


# ------------------------------- wrapper ------------------------------------
def lgblock_forward(x, params, *, n_heads, window, num_chunks=1):
    """num_chunks=1 (default): whole batch in one grid step (best on 1-TC v5e/v6e).
    num_chunks=2 keeps a 2-way 'parallel' grid axis to feed both v7x TensorCores."""
    B, T, D = x.shape
    assert B % num_chunks == 0
    seqs = B // num_chunks
    R = seqs * T
    bf16 = jnp.bfloat16

    cos, _, sin_signed = _rope_tables(T, D)
    cos_r = jnp.tile(cos, (seqs, 1))                    # (R, D)
    sin_r = jnp.tile(sin_signed, (seqs, 1))             # (R, D)
    bias = _chunk_bias(T, window, seqs)                 # (R, R) additive mask bias

    ordered = [params["ln_g"], params["ln_b"], cos_r, sin_r, bias,
               params["wqkv"].astype(bf16), params["bqkv"],
               params["wo"].astype(bf16), params["bo"],
               params["ff_ln_g"], params["ff_ln_b"],
               params["w1"].astype(bf16), params["b1"],
               params["w2"].astype(bf16), params["b2"]]

    x_chunks = x.reshape(num_chunks, R, D)
    seq_spec = pl.BlockSpec((1, R, D), lambda c: (c, 0, 0))

    def bcast(p):
        zeros = (0,) * p.ndim                           # per-call closure (no late binding)
        return pl.BlockSpec(p.shape, lambda c: zeros)

    out = pl.pallas_call(
        partial(_lgblock_kernel, n_heads=n_heads),
        out_shape=jax.ShapeDtypeStruct((num_chunks, R, D), jnp.float32),
        grid=(num_chunks,),
        in_specs=[seq_spec] + [bcast(p) for p in ordered],
        out_specs=seq_spec,
        compiler_params=pltpu.CompilerParams(
            dimension_semantics=("parallel",)),
    )(x_chunks, *ordered)
    return out.reshape(B, T, D)


# --------------------------- pure-JAX reference ------------------------------
def reference_forward(x, p, *, n_heads, window):
    B, T, D = x.shape
    dh = D // n_heads
    hp = jax.lax.Precision.HIGHEST
    cos, sin, _ = _rope_tables(T, D)
    bias = _local_mask_bias(T, window)

    y = _layernorm(x, p["ln_g"], p["ln_b"])
    half = D // 2
    rot = jnp.concatenate([-y[..., half:], y[..., :half]], axis=-1)   # rotate_half
    y = y * cos + rot * sin

    qkv = jnp.dot(y, p["wqkv"], precision=hp) + p["bqkv"]

    def heads(t):
        return t.reshape(B, T, n_heads, dh).transpose(0, 2, 1, 3)

    q, k, v = heads(qkv[..., :D]), heads(qkv[..., D:2 * D]), heads(qkv[..., 2 * D:])
    s = jnp.einsum("bhqd,bhkd->bhqk", q, k, precision=hp) / math.sqrt(dh) + bias
    a = jax.nn.softmax(s, axis=-1)
    h = jnp.einsum("bhqk,bhkd->bhqd", a, v, precision=hp)
    h = h.transpose(0, 2, 1, 3).reshape(B, T, D)
    x1 = x + jnp.dot(h, p["wo"], precision=hp) + p["bo"]
    z = _layernorm(x1, p["ln_g"], p["ln_b"])
    z = _layernorm(z, p["ff_ln_g"], p["ff_ln_b"])
    z = jax.nn.gelu(jnp.dot(z, p["w1"], precision=hp) + p["b1"], approximate=False)
    z = jnp.dot(z, p["w2"], precision=hp) + p["b2"]
    return x1 + z


# ------------------------------ param init ----------------------------------
def init_params(key, D, d_ff):
    ks = jax.random.split(key, 12)

    def w(i, shape, s=0.05):
        return jax.random.normal(ks[i], shape, jnp.float32) * s

    return dict(
        ln_g=1.0 + 0.1 * jax.random.normal(ks[0], (1, D), jnp.float32),
        ln_b=0.1 * jax.random.normal(ks[1], (1, D), jnp.float32),
        wqkv=w(2, (D, 3 * D)), bqkv=w(3, (1, 3 * D)),
        wo=w(4, (D, D)), bo=w(5, (1, D)),
        ff_ln_g=1.0 + 0.1 * jax.random.normal(ks[6], (1, D), jnp.float32),
        ff_ln_b=0.1 * jax.random.normal(ks[7], (1, D), jnp.float32),
        w1=w(8, (D, d_ff)), b1=w(9, (1, d_ff)),
        w2=w(10, (d_ff, D)), b2=w(11, (1, D)),
    )


if __name__ == "__main__":
    # Small shapes consistent with the module: d_model=32, n_heads=4, ff_mult=4.
    # window=2 (the module default 50 would ban *every* position at T=16 and
    # produce NaN rows in the PyTorch reference too).
    B, T, D, H = 2, 16, 32, 4
    WINDOW = 2
    D_FF = 4 * D

    root = jax.random.PRNGKey(0)
    kx, kparams = jax.random.split(root)
    x = jax.random.normal(kx, (B, T, D), jnp.float32)
    params = init_params(kparams, D, D_FF)

    out = lgblock_forward(x, params, n_heads=H, window=WINDOW)
    out = jax.block_until_ready(out)

    ref = reference_forward(x, params, n_heads=H, window=WINDOW)
    max_err = float(jnp.max(jnp.abs(out - ref)))
    if not (max_err < 2e-2):
        raise SystemExit(f"mismatch vs reference: max_err={max_err}")
    print("KERNEL_OK")
</pallas_src>

<mosaic_0001>
module attributes {stable_mosaic.version = 11 : i64} {
  func.func @_lgblock_kernel(%arg0: i32, %arg1: memref<1x32x32xf32, #tpu.memory_space<vmem>>, %arg2: memref<1x32xf32, #tpu.memory_space<vmem>>, %arg3: memref<1x32xf32, #tpu.memory_space<vmem>>, %arg4: memref<32x32xf32, #tpu.memory_space<vmem>>, %arg5: memref<32x32xf32, #tpu.memory_space<vmem>>, %arg6: memref<32x32xf32, #tpu.memory_space<vmem>>, %arg7: memref<32x96xbf16, #tpu.memory_space<vmem>>, %arg8: memref<1x96xf32, #tpu.memory_space<vmem>>, %arg9: memref<32x32xbf16, #tpu.memory_space<vmem>>, %arg10: memref<1x32xf32, #tpu.memory_space<vmem>>, %arg11: memref<1x32xf32, #tpu.memory_space<vmem>>, %arg12: memref<1x32xf32, #tpu.memory_space<vmem>>, %arg13: memref<32x128xbf16, #tpu.memory_space<vmem>>, %arg14: memref<1x128xf32, #tpu.memory_space<vmem>>, %arg15: memref<128x32xbf16, #tpu.memory_space<vmem>>, %arg16: memref<1x32xf32, #tpu.memory_space<vmem>>, %arg17: memref<1x32x32xf32, #tpu.memory_space<vmem>>) attributes {dimension_semantics = [#tpu.dimension_semantics<parallel>], iteration_bounds = array<i64: 1>, scalar_prefetch = 0 : i64, scratch_operands = 0 : i64, tpu.core_type = #tpu.core_type<tc>, window_params = [{transform_indices = @transform_0, window_bounds = array<i64: 1, 32, 32>}, {pipeline_mode = #tpu.pipeline_mode<synchronous>, transform_indices = @transform_1, window_bounds = array<i64: 1, 32>}, {pipeline_mode = #tpu.pipeline_mode<synchronous>, transform_indices = @transform_2, window_bounds = array<i64: 1, 32>}, {pipeline_mode = #tpu.pipeline_mode<synchronous>, transform_indices = @transform_3, window_bounds = array<i64: 32, 32>}, {pipeline_mode = #tpu.pipeline_mode<synchronous>, transform_indices = @transform_4, window_bounds = array<i64: 32, 32>}, {pipeline_mode = #tpu.pipeline_mode<synchronous>, transform_indices = @transform_5, window_bounds = array<i64: 32, 32>}, {pipeline_mode = #tpu.pipeline_mode<synchronous>, transform_indices = @transform_6, window_bounds = array<i64: 32, 96>}, {pipeline_mode = #tpu.pipeline_mode<synchronous>, transform_indices = @transform_7, window_bounds = array<i64: 1, 96>}, {pipeline_mode = #tpu.pipeline_mode<synchronous>, transform_indices = @transform_8, window_bounds = array<i64: 32, 32>}, {pipeline_mode = #tpu.pipeline_mode<synchronous>, transform_indices = @transform_9, window_bounds = array<i64: 1, 32>}, {pipeline_mode = #tpu.pipeline_mode<synchronous>, transform_indices = @transform_10, window_bounds = array<i64: 1, 32>}, {pipeline_mode = #tpu.pipeline_mode<synchronous>, transform_indices = @transform_11, window_bounds = array<i64: 1, 32>}, {pipeline_mode = #tpu.pipeline_mode<synchronous>, transform_indices = @transform_12, window_bounds = array<i64: 32, 128>}, {pipeline_mode = #tpu.pipeline_mode<synchronous>, transform_indices = @transform_13, window_bounds = array<i64: 1, 128>}, {pipeline_mode = #tpu.pipeline_mode<synchronous>, transform_indices = @transform_14, window_bounds = array<i64: 128, 32>}, {pipeline_mode = #tpu.pipeline_mode<synchronous>, transform_indices = @transform_15, window_bounds = array<i64: 1, 32>}, {transform_indices = @transform_16, window_bounds = array<i64: 1, 32, 32>}]} {
    %c0 = arith.constant 0 : index
    %c0_0 = arith.constant 0 : index
    %c0_1 = arith.constant 0 : index
    %0 = vector.load %arg1[%c0, %c0_0, %c0_1] : memref<1x32x32xf32, #tpu.memory_space<vmem>>, vector<1x32x32xf32>
    %1 = vector.shape_cast %0 : vector<1x32x32xf32> to vector<32x32xf32>
    %c0_2 = arith.constant 0 : index
    %c0_3 = arith.constant 0 : index
    %2 = vector.load %arg2[%c0_2, %c0_3] : memref<1x32xf32, #tpu.memory_space<vmem>>, vector<1x32xf32>
    %c0_4 = arith.constant 0 : index
    %c0_5 = arith.constant 0 : index
    %3 = vector.load %arg3[%c0_4, %c0_5] : memref<1x32xf32, #tpu.memory_space<vmem>>, vector<1x32xf32>
    %cst = arith.constant dense<0.000000e+00> : vector<32xf32>
    %4 = vector.multi_reduction <add>, %1, %cst [1] : vector<32x32xf32> to vector<32xf32>
    %5 = vector.shape_cast %4 : vector<32xf32> to vector<32x1xf32>
    %cst_6 = arith.constant 3.200000e+01 : f32
    %6 = vector.broadcast %cst_6 : f32 to vector<32x1xf32>
    %7 = arith.divf %5, %6 : vector<32x1xf32>
    %8 = vector.broadcast %7 : vector<32x1xf32> to vector<32x32xf32>
    %9 = arith.subf %1, %8 : vector<32x32xf32>
    %10 = arith.mulf %9, %9 : vector<32x32xf32>
    %cst_7 = arith.constant dense<0.000000e+00> : vector<32xf32>
    %11 = vector.multi_reduction <add>, %10, %cst_7 [1] : vector<32x32xf32> to vector<32xf32>
    %12 = vector.shape_cast %11 : vector<32xf32> to vector<32x1xf32>
    %cst_8 = arith.constant 3.200000e+01 : f32
    %13 = vector.broadcast %cst_8 : f32 to vector<32x1xf32>
    %14 = arith.divf %12, %13 : vector<32x1xf32>
    %15 = vector.broadcast %7 : vector<32x1xf32> to vector<32x32xf32>
    %16 = arith.subf %1, %15 : vector<32x32xf32>
    %cst_9 = arith.constant 9.99999974E-6 : f32
    %17 = vector.broadcast %cst_9 : f32 to vector<32x1xf32>
    %18 = arith.addf %14, %17 : vector<32x1xf32>
    %19 = math.rsqrt %18 : vector<32x1xf32>
    %20 = vector.broadcast %19 : vector<32x1xf32> to vector<32x32xf32>
    %21 = arith.mulf %16, %20 : vector<32x32xf32>
    %22 = vector.broadcast %2 : vector<1x32xf32> to vector<32x32xf32>
    %23 = arith.mulf %21, %22 : vector<32x32xf32>
    %24 = vector.broadcast %3 : vector<1x32xf32> to vector<32x32xf32>
    %25 = arith.addf %23, %24 : vector<32x32xf32>
    %26 = vector.extract_strided_slice %25 {offsets = [0, 16], sizes = [32, 16], strides = [1, 1]} : vector<32x32xf32> to vector<32x16xf32>
    %27 = vector.extract_strided_slice %25 {offsets = [0, 0], sizes = [32, 16], strides = [1, 1]} : vector<32x32xf32> to vector<32x16xf32>
    %28 = tpu.concatenate %26, %27 in 1 : vector<32x16xf32>, vector<32x16xf32> -> vector<32x32xf32>
    %c0_10 = arith.constant 0 : index
    %c0_11 = arith.constant 0 : index
    %29 = vector.load %arg4[%c0_10, %c0_11] : memref<32x32xf32, #tpu.memory_space<vmem>>, vector<32x32xf32>
    %30 = arith.mulf %25, %29 : vector<32x32xf32>
    %c0_12 = arith.constant 0 : index
    %c0_13 = arith.constant 0 : index
    %31 = vector.load %arg5[%c0_12, %c0_13] : memref<32x32xf32, #tpu.memory_space<vmem>>, vector<32x32xf32>
    %32 = arith.mulf %28, %31 : vector<32x32xf32>
    %33 = arith.addf %30, %32 : vector<32x32xf32>
    %34 = arith.truncf %33 : vector<32x32xf32> to vector<32x32xbf16>
    %c0_14 = arith.constant 0 : index
    %c0_15 = arith.constant 0 : index
    %35 = vector.load %arg7[%c0_14, %c0_15] : memref<32x96xbf16, #tpu.memory_space<vmem>>, vector<32x96xbf16>
    %cst_16 = arith.constant dense<0.000000e+00> : vector<32x96xf32>
    %36 = tpu.matmul %34, %35, %cst_16 {dimension_numbers = #tpu.dot_dimension_numbers<[1], [0], [0], [1], [0, 0, 1, 1], [], []>} : vector<32x32xbf16>, vector<32x96xbf16>, vector<32x96xf32> -> vector<32x96xf32>
    %c0_17 = arith.constant 0 : index
    %c0_18 = arith.constant 0 : index
    %37 = vector.load %arg8[%c0_17, %c0_18] : memref<1x96xf32, #tpu.memory_space<vmem>>, vector<1x96xf32>
    %38 = vector.broadcast %37 : vector<1x96xf32> to vector<32x96xf32>
    %39 = arith.addf %36, %38 : vector<32x96xf32>
    %40 = vector.extract_strided_slice %39 {offsets = [0, 0], sizes = [32, 32], strides = [1, 1]} : vector<32x96xf32> to vector<32x32xf32>
    %cst_19 = arith.constant 0.353553385 : f32
    %41 = vector.broadcast %cst_19 : f32 to vector<32x32xf32>
    %42 = arith.mulf %40, %41 : vector<32x32xf32>
    %43 = arith.truncf %42 : vector<32x32xf32> to vector<32x32xbf16>
    %44 = vector.extract_strided_slice %39 {offsets = [0, 32], sizes = [32, 32], strides = [1, 1]} : vector<32x96xf32> to vector<32x32xf32>
    %45 = arith.truncf %44 : vector<32x32xf32> to vector<32x32xbf16>
    %46 = vector.extract_strided_slice %39 {offsets = [0, 64], sizes = [32, 32], strides = [1, 1]} : vector<32x96xf32> to vector<32x32xf32>
    %47 = arith.truncf %46 : vector<32x32xf32> to vector<32x32xbf16>
    %c0_20 = arith.constant 0 : index
    %c0_21 = arith.constant 0 : index
    %48 = vector.load %arg6[%c0_20, %c0_21] : memref<32x32xf32, #tpu.memory_space<vmem>>, vector<32x32xf32>
    %49 = vector.extract_strided_slice %43 {offsets = [0, 0], sizes = [32, 8], strides = [1, 1]} : vector<32x32xbf16> to vector<32x8xbf16>
    %50 = vector.extract_strided_slice %45 {offsets = [0, 0], sizes = [32, 8], strides = [1, 1]} : vector<32x32xbf16> to vector<32x8xbf16>
    %cst_22 = arith.constant dense<0.000000e+00> : vector<32x32xf32>
    %51 = tpu.matmul %49, %50, %cst_22 {dimension_numbers = #tpu.dot_dimension_numbers<[1], [1], [0], [0], [0, 0, 1, 0], [], []>} : vector<32x8xbf16>, vector<32x8xbf16>, vector<32x32xf32> -> vector<32x32xf32>
    %52 = arith.addf %51, %48 : vector<32x32xf32>
    %cst_23 = arith.constant dense<0xFF800000> : vector<32xf32>
    %53 = vector.multi_reduction <maximumf>, %52, %cst_23 [1] : vector<32x32xf32> to vector<32xf32>
    %54 = vector.shape_cast %53 : vector<32xf32> to vector<32x1xf32>
    %55 = vector.broadcast %54 : vector<32x1xf32> to vector<32x32xf32>
    %56 = arith.subf %52, %55 : vector<32x32xf32>
    %57 = math.exp %56 : vector<32x32xf32>
    %cst_24 = arith.constant dense<0.000000e+00> : vector<32xf32>
    %58 = vector.multi_reduction <add>, %57, %cst_24 [1] : vector<32x32xf32> to vector<32xf32>
    %59 = vector.shape_cast %58 : vector<32xf32> to vector<32x1xf32>
    %60 = vector.broadcast %59 : vector<32x1xf32> to vector<32x32xf32>
    %61 = arith.divf %57, %60 : vector<32x32xf32>
    %62 = arith.truncf %61 : vector<32x32xf32> to vector<32x32xbf16>
    %63 = vector.extract_strided_slice %47 {offsets = [0, 0], sizes = [32, 8], strides = [1, 1]} : vector<32x32xbf16> to vector<32x8xbf16>
    %cst_25 = arith.constant dense<0.000000e+00> : vector<32x8xf32>
    %64 = tpu.matmul %62, %63, %cst_25 {dimension_numbers = #tpu.dot_dimension_numbers<[1], [0], [0], [1], [0, 0, 1, 1], [], []>} : vector<32x32xbf16>, vector<32x8xbf16>, vector<32x8xf32> -> vector<32x8xf32>
    %65 = vector.extract_strided_slice %43 {offsets = [0, 8], sizes = [32, 8], strides = [1, 1]} : vector<32x32xbf16> to vector<32x8xbf16>
    %66 = vector.extract_strided_slice %45 {offsets = [0, 8], sizes = [32, 8], strides = [1, 1]} : vector<32x32xbf16> to vector<32x8xbf16>
    %cst_26 = arith.constant dense<0.000000e+00> : vector<32x32xf32>
    %67 = tpu.matmul %65, %66, %cst_26 {dimension_numbers = #tpu.dot_dimension_numbers<[1], [1], [0], [0], [0, 0, 1, 0], [], []>} : vector<32x8xbf16>, vector<32x8xbf16>, vector<32x32xf32> -> vector<32x32xf32>
    %68 = arith.addf %67, %48 : vector<32x32xf32>
    %cst_27 = arith.constant dense<0xFF800000> : vector<32xf32>
    %69 = vector.multi_reduction <maximumf>, %68, %cst_27 [1] : vector<32x32xf32> to vector<32xf32>
    %70 = vector.shape_cast %69 : vector<32xf32> to vector<32x1xf32>
    %71 = vector.broadcast %70 : vector<32x1xf32> to vector<32x32xf32>
    %72 = arith.subf %68, %71 : vector<32x32xf32>
    %73 = math.exp %72 : vector<32x32xf32>
    %cst_28 = arith.constant dense<0.000000e+00> : vector<32xf32>
    %74 = vector.multi_reduction <add>, %73, %cst_28 [1] : vector<32x32xf32> to vector<32xf32>
    %75 = vector.shape_cast %74 : vector<32xf32> to vector<32x1xf32>
    %76 = vector.broadcast %75 : vector<32x1xf32> to vector<32x32xf32>
    %77 = arith.divf %73, %76 : vector<32x32xf32>
    %78 = arith.truncf %77 : vector<32x32xf32> to vector<32x32xbf16>
    %79 = vector.extract_strided_slice %47 {offsets = [0, 8], sizes = [32, 8], strides = [1, 1]} : vector<32x32xbf16> to vector<32x8xbf16>
    %cst_29 = arith.constant dense<0.000000e+00> : vector<32x8xf32>
    %80 = tpu.matmul %78, %79, %cst_29 {dimension_numbers = #tpu.dot_dimension_numbers<[1], [0], [0], [1], [0, 0, 1, 1], [], []>} : vector<32x32xbf16>, vector<32x8xbf16>, vector<32x8xf32> -> vector<32x8xf32>
    %81 = vector.extract_strided_slice %43 {offsets = [0, 16], sizes = [32, 8], strides = [1, 1]} : vector<32x32xbf16> to vector<32x8xbf16>
    %82 = vector.extract_strided_slice %45 {offsets = [0, 16], sizes = [32, 8], strides = [1, 1]} : vector<32x32xbf16> to vector<32x8xbf16>
    %cst_30 = arith.constant dense<0.000000e+00> : vector<32x32xf32>
    %83 = tpu.matmul %81, %82, %cst_30 {dimension_numbers = #tpu.dot_dimension_numbers<[1], [1], [0], [0], [0, 0, 1, 0], [], []>} : vector<32x8xbf16>, vector<32x8xbf16>, vector<32x32xf32> -> vector<32x32xf32>
    %84 = arith.addf %83, %48 : vector<32x32xf32>
    %cst_31 = arith.constant dense<0xFF800000> : vector<32xf32>
    %85 = vector.multi_reduction <maximumf>, %84, %cst_31 [1] : vector<32x32xf32> to vector<32xf32>
    %86 = vector.shape_cast %85 : vector<32xf32> to vector<32x1xf32>
    %87 = vector.broadcast %86 : vector<32x1xf32> to vector<32x32xf32>
    %88 = arith.subf %84, %87 : vector<32x32xf32>
    %89 = math.exp %88 : vector<32x32xf32>
    %cst_32 = arith.constant dense<0.000000e+00> : vector<32xf32>
    %90 = vector.multi_reduction <add>, %89, %cst_32 [1] : vector<32x32xf32> to vector<32xf32>
    %91 = vector.shape_cast %90 : vector<32xf32> to vector<32x1xf32>
    %92 = vector.broadcast %91 : vector<32x1xf32> to vector<32x32xf32>
    %93 = arith.divf %89, %92 : vector<32x32xf32>
    %94 = arith.truncf %93 : vector<32x32xf32> to vector<32x32xbf16>
    %95 = vector.extract_strided_slice %47 {offsets = [0, 16], sizes = [32, 8], strides = [1, 1]} : vector<32x32xbf16> to vector<32x8xbf16>
    %cst_33 = arith.constant dense<0.000000e+00> : vector<32x8xf32>
    %96 = tpu.matmul %94, %95, %cst_33 {dimension_numbers = #tpu.dot_dimension_numbers<[1], [0], [0], [1], [0, 0, 1, 1], [], []>} : vector<32x32xbf16>, vector<32x8xbf16>, vector<32x8xf32> -> vector<32x8xf32>
    %97 = vector.extract_strided_slice %43 {offsets = [0, 24], sizes = [32, 8], strides = [1, 1]} : vector<32x32xbf16> to vector<32x8xbf16>
    %98 = vector.extract_strided_slice %45 {offsets = [0, 24], sizes = [32, 8], strides = [1, 1]} : vector<32x32xbf16> to vector<32x8xbf16>
    %cst_34 = arith.constant dense<0.000000e+00> : vector<32x32xf32>
    %99 = tpu.matmul %97, %98, %cst_34 {dimension_numbers = #tpu.dot_dimension_numbers<[1], [1], [0], [0], [0, 0, 1, 0], [], []>} : vector<32x8xbf16>, vector<32x8xbf16>, vector<32x32xf32> -> vector<32x32xf32>
    %100 = arith.addf %99, %48 : vector<32x32xf32>
    %cst_35 = arith.constant dense<0xFF800000> : vector<32xf32>
    %101 = vector.multi_reduction <maximumf>, %100, %cst_35 [1] : vector<32x32xf32> to vector<32xf32>
    %102 = vector.shape_cast %101 : vector<32xf32> to vector<32x1xf32>
    %103 = vector.broadcast %102 : vector<32x1xf32> to vector<32x32xf32>
    %104 = arith.subf %100, %103 : vector<32x32xf32>
    %105 = math.exp %104 : vector<32x32xf32>
    %cst_36 = arith.constant dense<0.000000e+00> : vector<32xf32>
    %106 = vector.multi_reduction <add>, %105, %cst_36 [1] : vector<32x32xf32> to vector<32xf32>
    %107 = vector.shape_cast %106 : vector<32xf32> to vector<32x1xf32>
    %108 = vector.broadcast %107 : vector<32x1xf32> to vector<32x32xf32>
    %109 = arith.divf %105, %108 : vector<32x32xf32>
    %110 = arith.truncf %109 : vector<32x32xf32> to vector<32x32xbf16>
    %111 = vector.extract_strided_slice %47 {offsets = [0, 24], sizes = [32, 8], strides = [1, 1]} : vector<32x32xbf16> to vector<32x8xbf16>
    %cst_37 = arith.constant dense<0.000000e+00> : vector<32x8xf32>
    %112 = tpu.matmul %110, %111, %cst_37 {dimension_numbers = #tpu.dot_dimension_numbers<[1], [0], [0], [1], [0, 0, 1, 1], [], []>} : vector<32x32xbf16>, vector<32x8xbf16>, vector<32x8xf32> -> vector<32x8xf32>
    %113 = tpu.concatenate %64, %80, %96, %112 in 1 : vector<32x8xf32>, vector<32x8xf32>, vector<32x8xf32>, vector<32x8xf32> -> vector<32x32xf32>
    %114 = arith.truncf %113 : vector<32x32xf32> to vector<32x32xbf16>
    %c0_38 = arith.constant 0 : index
    %c0_39 = arith.constant 0 : index
    %115 = vector.load %arg9[%c0_38, %c0_39] : memref<32x32xbf16, #tpu.memory_space<vmem>>, vector<32x32xbf16>
    %cst_40 = arith.constant dense<0.000000e+00> : vector<32x32xf32>
    %116 = tpu.matmul %114, %115, %cst_40 {dimension_numbers = #tpu.dot_dimension_numbers<[1], [0], [0], [1], [0, 0, 1, 1], [], []>} : vector<32x32xbf16>, vector<32x32xbf16>, vector<32x32xf32> -> vector<32x32xf32>
    %c0_41 = arith.constant 0 : index
    %c0_42 = arith.constant 0 : index
    %117 = vector.load %arg10[%c0_41, %c0_42] : memref<1x32xf32, #tpu.memory_space<vmem>>, vector<1x32xf32>
    %118 = vector.broadcast %117 : vector<1x32xf32> to vector<32x32xf32>
    %119 = arith.addf %116, %118 : vector<32x32xf32>
    %120 = arith.addf %1, %119 : vector<32x32xf32>
    %c0_43 = arith.constant 0 : index
    %c0_44 = arith.constant 0 : index
    %121 = vector.load %arg2[%c0_43, %c0_44] : memref<1x32xf32, #tpu.memory_space<vmem>>, vector<1x32xf32>
    %c0_45 = arith.constant 0 : index
    %c0_46 = arith.constant 0 : index
    %122 = vector.load %arg3[%c0_45, %c0_46] : memref<1x32xf32, #tpu.memory_space<vmem>>, vector<1x32xf32>
    %cst_47 = arith.constant dense<0.000000e+00> : vector<32xf32>
    %123 = vector.multi_reduction <add>, %120, %cst_47 [1] : vector<32x32xf32> to vector<32xf32>
    %124 = vector.shape_cast %123 : vector<32xf32> to vector<32x1xf32>
    %cst_48 = arith.constant 3.200000e+01 : f32
    %125 = vector.broadcast %cst_48 : f32 to vector<32x1xf32>
    %126 = arith.divf %124, %125 : vector<32x1xf32>
    %127 = vector.broadcast %126 : vector<32x1xf32> to vector<32x32xf32>
    %128 = arith.subf %120, %127 : vector<32x32xf32>
    %129 = arith.mulf %128, %128 : vector<32x32xf32>
    %cst_49 = arith.constant dense<0.000000e+00> : vector<32xf32>
    %130 = vector.multi_reduction <add>, %129, %cst_49 [1] : vector<32x32xf32> to vector<32xf32>
    %131 = vector.shape_cast %130 : vector<32xf32> to vector<32x1xf32>
    %cst_50 = arith.constant 3.200000e+01 : f32
    %132 = vector.broadcast %cst_50 : f32 to vector<32x1xf32>
    %133 = arith.divf %131, %132 : vector<32x1xf32>
    %134 = vector.broadcast %126 : vector<32x1xf32> to vector<32x32xf32>
    %135 = arith.subf %120, %134 : vector<32x32xf32>
    %cst_51 = arith.constant 9.99999974E-6 : f32
    %136 = vector.broadcast %cst_51 : f32 to vector<32x1xf32>
    %137 = arith.addf %133, %136 : vector<32x1xf32>
    %138 = math.rsqrt %137 : vector<32x1xf32>
    %139 = vector.broadcast %138 : vector<32x1xf32> to vector<32x32xf32>
    %140 = arith.mulf %135, %139 : vector<32x32xf32>
    %141 = vector.broadcast %121 : vector<1x32xf32> to vector<32x32xf32>
    %142 = arith.mulf %140, %141 : vector<32x32xf32>
    %143 = vector.broadcast %122 : vector<1x32xf32> to vector<32x32xf32>
    %144 = arith.addf %142, %143 : vector<32x32xf32>
    %c0_52 = arith.constant 0 : index
    %c0_53 = arith.constant 0 : index
    %145 = vector.load %arg11[%c0_52, %c0_53] : memref<1x32xf32, #tpu.memory_space<vmem>>, vector<1x32xf32>
    %c0_54 = arith.constant 0 : index
    %c0_55 = arith.constant 0 : index
    %146 = vector.load %arg12[%c0_54, %c0_55] : memref<1x32xf32, #tpu.memory_space<vmem>>, vector<1x32xf32>
    %cst_56 = arith.constant dense<0.000000e+00> : vector<32xf32>
    %147 = vector.multi_reduction <add>, %144, %cst_56 [1] : vector<32x32xf32> to vector<32xf32>
    %148 = vector.shape_cast %147 : vector<32xf32> to vector<32x1xf32>
    %cst_57 = arith.constant 3.200000e+01 : f32
    %149 = vector.broadcast %cst_57 : f32 to vector<32x1xf32>
    %150 = arith.divf %148, %149 : vector<32x1xf32>
    %151 = vector.broadcast %150 : vector<32x1xf32> to vector<32x32xf32>
    %152 = arith.subf %144, %151 : vector<32x32xf32>
    %153 = arith.mulf %152, %152 : vector<32x32xf32>
    %cst_58 = arith.constant dense<0.000000e+00> : vector<32xf32>
    %154 = vector.multi_reduction <add>, %153, %cst_58 [1] : vector<32x32xf32> to vector<32xf32>
    %155 = vector.shape_cast %154 : vector<32xf32> to vector<32x1xf32>
    %cst_59 = arith.constant 3.200000e+01 : f32
    %156 = vector.broadcast %cst_59 : f32 to vector<32x1xf32>
    %157 = arith.divf %155, %156 : vector<32x1xf32>
    %158 = vector.broadcast %150 : vector<32x1xf32> to vector<32x32xf32>
    %159 = arith.subf %144, %158 : vector<32x32xf32>
    %cst_60 = arith.constant 9.99999974E-6 : f32
    %160 = vector.broadcast %cst_60 : f32 to vector<32x1xf32>
    %161 = arith.addf %157, %160 : vector<32x1xf32>
    %162 = math.rsqrt %161 : vector<32x1xf32>
    %163 = vector.broadcast %162 : vector<32x1xf32> to vector<32x32xf32>
    %164 = arith.mulf %159, %163 : vector<32x32xf32>
    %165 = vector.broadcast %145 : vector<1x32xf32> to vector<32x32xf32>
    %166 = arith.mulf %164, %165 : vector<32x32xf32>
    %167 = vector.broadcast %146 : vector<1x32xf32> to vector<32x32xf32>
    %168 = arith.addf %166, %167 : vector<32x32xf32>
    %169 = arith.truncf %168 : vector<32x32xf32> to vector<32x32xbf16>
    %c0_61 = arith.constant 0 : index
    %c0_62 = arith.constant 0 : index
    %170 = vector.load %arg13[%c0_61, %c0_62] : memref<32x128xbf16, #tpu.memory_space<vmem>>, vector<32x128xbf16>
    %cst_63 = arith.constant dense<0.000000e+00> : vector<32x128xf32>
    %171 = tpu.matmul %169, %170, %cst_63 {dimension_numbers = #tpu.dot_dimension_numbers<[1], [0], [0], [1], [0, 0, 1, 1], [], []>} : vector<32x32xbf16>, vector<32x128xbf16>, vector<32x128xf32> -> vector<32x128xf32>
    %c0_64 = arith.constant 0 : index
    %c0_65 = arith.constant 0 : index
    %172 = vector.load %arg14[%c0_64, %c0_65] : memref<1x128xf32, #tpu.memory_space<vmem>>, vector<1x128xf32>
    %173 = vector.broadcast %172 : vector<1x128xf32> to vector<32x128xf32>
    %174 = arith.addf %171, %173 : vector<32x128xf32>
    %cst_66 = arith.constant 5.000000e-01 : f32
    %175 = vector.broadcast %cst_66 : f32 to vector<32x128xf32>
    %176 = arith.mulf %175, %174 : vector<32x128xf32>
    %cst_67 = arith.constant 0.707106769 : f32
    %177 = vector.broadcast %cst_67 : f32 to vector<32x128xf32>
    %178 = arith.mulf %174, %177 : vector<32x128xf32>
    %cst_68 = arith.constant 0.000000e+00 : f32
    %179 = vector.broadcast %cst_68 : f32 to vector<32x128xf32>
    %180 = arith.cmpf oge, %178, %179 : vector<32x128xf32>
    %cst_69 = arith.constant 1.000000e+00 : f32
    %cst_70 = arith.constant -1.000000e+00 : f32
    %181 = vector.broadcast %cst_69 : f32 to vector<32x128xf32>
    %182 = vector.broadcast %cst_70 : f32 to vector<32x128xf32>
    %183 = arith.select %180, %181, %182 : vector<32x128xi1>, vector<32x128xf32>
    %184 = math.absf %178 : vector<32x128xf32>
    %cst_71 = arith.constant 0.327591091 : f32
    %185 = vector.broadcast %cst_71 : f32 to vector<32x128xf32>
    %186 = arith.mulf %185, %184 : vector<32x128xf32>
    %cst_72 = arith.constant 1.000000e+00 : f32
    %187 = vector.broadcast %cst_72 : f32 to vector<32x128xf32>
    %188 = arith.addf %187, %186 : vector<32x128xf32>
    %cst_73 = arith.constant 1.000000e+00 : f32
    %189 = vector.broadcast %cst_73 : f32 to vector<32x128xf32>
    %190 = arith.divf %189, %188 : vector<32x128xf32>
    %cst_74 = arith.constant 1.06140542 : f32
    %191 = vector.broadcast %cst_74 : f32 to vector<32x128xf32>
    %192 = arith.mulf %191, %190 : vector<32x128xf32>
    %cst_75 = arith.constant -1.45315206 : f32
    %193 = vector.broadcast %cst_75 : f32 to vector<32x128xf32>
    %194 = arith.addf %192, %193 : vector<32x128xf32>
    %195 = arith.mulf %194, %190 : vector<32x128xf32>
    %cst_76 = arith.constant 1.42141378 : f32
    %196 = vector.broadcast %cst_76 : f32 to vector<32x128xf32>
    %197 = arith.addf %195, %196 : vector<32x128xf32>
    %198 = arith.mulf %197, %190 : vector<32x128xf32>
    %cst_77 = arith.constant -0.284496725 : f32
    %199 = vector.broadcast %cst_77 : f32 to vector<32x128xf32>
    %200 = arith.addf %198, %199 : vector<32x128xf32>
    %201 = arith.mulf %200, %190 : vector<32x128xf32>
    %cst_78 = arith.constant 0.254829586 : f32
    %202 = vector.broadcast %cst_78 : f32 to vector<32x128xf32>
    %203 = arith.addf %201, %202 : vector<32x128xf32>
    %204 = arith.mulf %203, %190 : vector<32x128xf32>
    %cst_79 = arith.constant 0.000000e+00 : f32
    %205 = vector.broadcast %cst_79 : f32 to vector<32x128xf32>
    %206 = arith.subf %205, %184 : vector<32x128xf32>
    %207 = arith.mulf %206, %184 : vector<32x128xf32>
    %208 = math.exp %207 : vector<32x128xf32>
    %209 = arith.mulf %204, %208 : vector<32x128xf32>
    %cst_80 = arith.constant 1.000000e+00 : f32
    %210 = vector.broadcast %cst_80 : f32 to vector<32x128xf32>
    %211 = arith.subf %210, %209 : vector<32x128xf32>
    %212 = arith.mulf %183, %211 : vector<32x128xf32>
    %cst_81 = arith.constant 1.000000e+00 : f32
    %213 = vector.broadcast %cst_81 : f32 to vector<32x128xf32>
    %214 = arith.addf %213, %212 : vector<32x128xf32>
    %215 = arith.mulf %176, %214 : vector<32x128xf32>
    %216 = arith.truncf %215 : vector<32x128xf32> to vector<32x128xbf16>
    %c0_82 = arith.constant 0 : index
    %c0_83 = arith.constant 0 : index
    %217 = vector.load %arg15[%c0_82, %c0_83] : memref<128x32xbf16, #tpu.memory_space<vmem>>, vector<128x32xbf16>
    %cst_84 = arith.constant dense<0.000000e+00> : vector<32x32xf32>
    %218 = tpu.matmul %216, %217, %cst_84 {dimension_numbers = #tpu.dot_dimension_numbers<[1], [0], [0], [1], [0, 0, 1, 1], [], []>} : vector<32x128xbf16>, vector<128x32xbf16>, vector<32x32xf32> -> vector<32x32xf32>
    %c0_85 = arith.constant 0 : index
    %c0_86 = arith.constant 0 : index
    %219 = vector.load %arg16[%c0_85, %c0_86] : memref<1x32xf32, #tpu.memory_space<vmem>>, vector<1x32xf32>
    %220 = vector.broadcast %219 : vector<1x32xf32> to vector<32x32xf32>
    %221 = arith.addf %218, %220 : vector<32x32xf32>
    %222 = arith.addf %120, %221 : vector<32x32xf32>
    %c0_87 = arith.constant 0 : index
    %c0_88 = arith.constant 0 : index
    %c0_89 = arith.constant 0 : index
    %223 = vector.load %arg17[%c0_87, %c0_88, %c0_89] : memref<1x32x32xf32, #tpu.memory_space<vmem>>, vector<1x32x32xf32>
    %224 = vector.shape_cast %223 : vector<1x32x32xf32> to vector<32x32xf32>
    %225 = vector.shape_cast %222 : vector<32x32xf32> to vector<1x32x32xf32>
    tpu.vector_store %arg17[%c0_87, %c0_88, %c0_89], %225 {strides = array<i32>} : memref<1x32x32xf32, #tpu.memory_space<vmem>>, vector<1x32x32xf32>,
    return
  }
  func.func @transform_0(%arg0: i32) -> (i32, i32, i32) {
    %c0_i32 = arith.constant 0 : i32
    %c0_i32_0 = arith.constant 0 : i32
    %c0_i32_1 = arith.constant 0 : i32
    return %arg0, %c0_i32, %c0_i32_0 : i32, i32, i32
  }
  func.func @transform_1(%arg0: i32) -> (i32, i32) {
    %c0_i32 = arith.constant 0 : i32
    %c0_i32_0 = arith.constant 0 : i32
    %c0_i32_1 = arith.constant 0 : i32
    return %c0_i32, %c0_i32_0 : i32, i32
  }
  func.func @transform_2(%arg0: i32) -> (i32, i32) {
    %c0_i32 = arith.constant 0 : i32
    %c0_i32_0 = arith.constant 0 : i32
    %c0_i32_1 = arith.constant 0 : i32
    return %c0_i32, %c0_i32_0 : i32, i32
  }
  func.func @transform_3(%arg0: i32) -> (i32, i32) {
    %c0_i32 = arith.constant 0 : i32
    %c0_i32_0 = arith.constant 0 : i32
    %c0_i32_1 = arith.constant 0 : i32
    return %c0_i32, %c0_i32_0 : i32, i32
  }
  func.func @transform_4(%arg0: i32) -> (i32, i32) {
    %c0_i32 = arith.constant 0 : i32
    %c0_i32_0 = arith.constant 0 : i32
    %c0_i32_1 = arith.constant 0 : i32
    return %c0_i32, %c0_i32_0 : i32, i32
  }
  func.func @transform_5(%arg0: i32) -> (i32, i32) {
    %c0_i32 = arith.constant 0 : i32
    %c0_i32_0 = arith.constant 0 : i32
    %c0_i32_1 = arith.constant 0 : i32
    return %c0_i32, %c0_i32_0 : i32, i32
  }
  func.func @transform_6(%arg0: i32) -> (i32, i32) {
    %c0_i32 = arith.constant 0 : i32
    %c0_i32_0 = arith.constant 0 : i32
    %c0_i32_1 = arith.constant 0 : i32
    return %c0_i32, %c0_i32_0 : i32, i32
  }
  func.func @transform_7(%arg0: i32) -> (i32, i32) {
    %c0_i32 = arith.constant 0 : i32
    %c0_i32_0 = arith.constant 0 : i32
    %c0_i32_1 = arith.constant 0 : i32
    return %c0_i32, %c0_i32_0 : i32, i32
  }
  func.func @transform_8(%arg0: i32) -> (i32, i32) {
    %c0_i32 = arith.constant 0 : i32
    %c0_i32_0 = arith.constant 0 : i32
    %c0_i32_1 = arith.constant 0 : i32
    return %c0_i32, %c0_i32_0 : i32, i32
  }
  func.func @transform_9(%arg0: i32) -> (i32, i32) {
    %c0_i32 = arith.constant 0 : i32
    %c0_i32_0 = arith.constant 0 : i32
    %c0_i32_1 = arith.constant 0 : i32
    return %c0_i32, %c0_i32_0 : i32, i32
  }
  func.func @transform_10(%arg0: i32) -> (i32, i32) {
    %c0_i32 = arith.constant 0 : i32
    %c0_i32_0 = arith.constant 0 : i32
    %c0_i32_1 = arith.constant 0 : i32
    return %c0_i32, %c0_i32_0 : i32, i32
  }
  func.func @transform_11(%arg0: i32) -> (i32, i32) {
    %c0_i32 = arith.constant 0 : i32
    %c0_i32_0 = arith.constant 0 : i32
    %c0_i32_1 = arith.constant 0 : i32
    return %c0_i32, %c0_i32_0 : i32, i32
  }
  func.func @transform_12(%arg0: i32) -> (i32, i32) {
    %c0_i32 = arith.constant 0 : i32
    %c0_i32_0 = arith.constant 0 : i32
    %c0_i32_1 = arith.constant 0 : i32
    return %c0_i32, %c0_i32_0 : i32, i32
  }
  func.func @transform_13(%arg0: i32) -> (i32, i32) {
    %c0_i32 = arith.constant 0 : i32
    %c0_i32_0 = arith.constant 0 : i32
    %c0_i32_1 = arith.constant 0 : i32
    return %c0_i32, %c0_i32_0 : i32, i32
  }
  func.func @transform_14(%arg0: i32) -> (i32, i32) {
    %c0_i32 = arith.constant 0 : i32
    %c0_i32_0 = arith.constant 0 : i32
    %c0_i32_1 = arith.constant 0 : i32
    return %c0_i32, %c0_i32_0 : i32, i32
  }
  func.func @transform_15(%arg0: i32) -> (i32, i32) {
    %c0_i32 = arith.constant 0 : i32
    %c0_i32_0 = arith.constant 0 : i32
    %c0_i32_1 = arith.constant 0 : i32
    return %c0_i32, %c0_i32_0 : i32, i32
  }
  func.func @transform_16(%arg0: i32) -> (i32, i32, i32) {
    %c0_i32 = arith.constant 0 : i32
    %c0_i32_0 = arith.constant 0 : i32
    %c0_i32_1 = arith.constant 0 : i32
    return %arg0, %c0_i32, %c0_i32_0 : i32, i32, i32
  }
}

</mosaic_0001>

<llo_original>
// kernel: tpu_custom_call.1
$region0: #{tpu_custom_call.1}
  #allocation0 [shape = 'u32[]', space=smem, size = 0x4, offset = 0x4, fixed_abs, tag = 'smem constant byte address 0x4 - core index']
  #allocation1 [shape = 'u32[144,128]{1,0:T(1,128)}', space=vmem, size = 0x12000, scoped, tag = 'internal scratch']
  %s0 = inlined_call_operand.vmem [shape: f32[1,32,32], index: 0, kind: input, shape index: {}]
  %s1 = inlined_call_operand.vmem [shape: f32[1,32], index: 1, kind: input, shape index: {}]
  %s2 = inlined_call_operand.vmem [shape: f32[1,32], index: 2, kind: input, shape index: {}]
  %s3 = inlined_call_operand.vmem [shape: f32[32,32], index: 3, kind: input, shape index: {}]
  %s4 = inlined_call_operand.hbm [shape: f32[32,32], index: 4, kind: input, shape index: {}]
  %s5 = inlined_call_operand.vmem [shape: f32[32,32], index: 5, kind: input, shape index: {}]
  %s6 = inlined_call_operand.hbm [shape: bf16[32,96], index: 6, kind: input, shape index: {}]
  %s7 = inlined_call_operand.hbm [shape: f32[1,96], index: 7, kind: input, shape index: {}]
  %s8 = inlined_call_operand.hbm [shape: bf16[32,32], index: 8, kind: input, shape index: {}]
  %s9 = inlined_call_operand.hbm [shape: f32[1,32], index: 9, kind: input, shape index: {}]
  %s10 = inlined_call_operand.vmem [shape: f32[1,32], index: 10, kind: input, shape index: {}]
  %s11 = inlined_call_operand.vmem [shape: f32[1,32], index: 11, kind: input, shape index: {}]
  %s12 = inlined_call_operand.hbm [shape: bf16[32,128], index: 12, kind: input, shape index: {}]
  %s13 = inlined_call_operand.vmem [shape: f32[1,128], index: 13, kind: input, shape index: {}]
  %s14 = inlined_call_operand.vmem [shape: bf16[128,32], index: 14, kind: input, shape index: {}]
  %s15 = inlined_call_operand.vmem [shape: f32[1,32], index: 15, kind: input, shape index: {}]
  %s16 = inlined_call_operand.hbm [shape: f32[1,32,32], index: 16, kind: output, shape index: {}]
  %s17 = sld [smem:[#allocation0]]
  $region98: #{tpu_custom_call.1} parent=0
    _
  %s19 = ssub.s32 1, %s17
  %s20 = scalar_select 0, %s19, %s17
  $region1: #{tpu_custom_call.1} parent=0
    #allocation2 [shape = 'u8[16384]{0}', space=vmem, size = 0x4000, scoped, tag = 'input window, operand 4, single buffered']
    #allocation3 [shape = 's32[1]{0}', space=sflag, size = 0x4, scoped, tag = 'scoped memory for tpu_custom_call.1']
    #allocation4 [shape = 's32[1]{0}', space=sflag, size = 0x4, scoped, tag = 'scoped memory for tpu_custom_call.1']
    #allocation5 [shape = 'u8[8192]{0}', space=vmem, size = 0x2000, scoped, tag = 'input window, operand 6, single buffered']
    #allocation6 [shape = 's32[1]{0}', space=sflag, size = 0x4, scoped, tag = 'scoped memory for tpu_custom_call.1']
    #allocation7 [shape = 'u8[512]{0}', space=vmem, size = 0x400, scoped, tag = 'input window, operand 7, single buffered']
    #allocation8 [shape = 'u8[8192]{0}', space=vmem, size = 0x2000, scoped, tag = 'input window, operand 8, single buffered']
    #allocation9 [shape = 's32[1]{0}', space=sflag, size = 0x4, scoped, tag = 'scoped memory for tpu_custom_call.1']
    #allocation10 [shape = 'u8[512]{0}', space=vmem, size = 0x400, scoped, tag = 'input window, operand 9, single buffered']
    #allocation11 [shape = 'u8[8192]{0}', space=vmem, size = 0x2000, scoped, tag = 'input window, operand 12, single buffered']
    #allocation12 [shape = 's32[1]{0}', space=sflag, size = 0x4, scoped, tag = 'scoped memory for tpu_custom_call.1']
    #allocation13 [shape = 'u8[16384]{0}', space=vmem, size = 0x4000, scoped, tag = 'output window, operand 0, single buffered']
    %21 = vsyncpa [#allocation3], 0
    %22 = vsyncpa [#allocation6], 0
    %23 = vsyncpa [#allocation9], 0
    %24 = vsyncpa [#allocation12], 0
    %25 = vsyncpa [#allocation4], 0
    // Predicated region
    $region2: #{tpu_custom_call.1} parent=1 // pred_check
      _
    $region3: #{tpu_custom_call.1} parent=1 // pred_check_branch
      %27 = sbr.rel (0) target = $region5
    $region4: #{tpu_custom_call.1} parent=1 // pred_region
      _
    $region5: #{tpu_custom_call.1} parent=1 // pred_fallthru
      _
    // Predicated region
    $region6: #{tpu_custom_call.1} parent=1 // pred_check
      _
    $region7: #{tpu_custom_call.1} parent=1 // pred_check_branch
      %29 = sbr.rel (0) target = $region9
    $region8: #{tpu_custom_call.1} parent=1 // pred_region
      _
    $region9: #{tpu_custom_call.1} parent=1 // pred_fallthru
      _
    // Predicated region
    $region10: #{tpu_custom_call.1} parent=1 // pred_check
      _
    $region11: #{tpu_custom_call.1} parent=1 // pred_check_branch
      %31 = sbr.rel (0) target = $region13
    $region12: #{tpu_custom_call.1} parent=1 // pred_region
      _
    $region13: #{tpu_custom_call.1} parent=1 // pred_fallthru
      _
    // Predicated region
    $region14: #{tpu_custom_call.1} parent=1 // pred_check
      _
    $region15: #{tpu_custom_call.1} parent=1 // pred_check_branch
      %33 = sbr.rel (0) target = $region17
    $region16: #{tpu_custom_call.1} parent=1 // pred_region
      _
    $region17: #{tpu_custom_call.1} parent=1 // pred_fallthru
      _
    // Predicated region
    $region18: #{tpu_custom_call.1} parent=1 // pred_check
      _
    $region19: #{tpu_custom_call.1} parent=1 // pred_check_branch
      %35 = sbr.rel (0) target = $region21
    $region20: #{tpu_custom_call.1} parent=1 // pred_region
      %s37 = ssub.s32 512, 512
      %38 = vsyncadd [#allocation3], %s37
      %s39 = sshll.u32 [#allocation2], 4
      %s40 = int_to_ptr.vmem [resolvable:$true] %s39
      %45 = dma.hbm_to_vmem [thread:$0]  %s4, 512, %s40, [#allocation3], 128, 128, 8
    $region21: #{tpu_custom_call.1} parent=1 // pred_fallthru
      _
    // Predicated region
    $region22: #{tpu_custom_call.1} parent=1 // pred_check
      _
    $region23: #{tpu_custom_call.1} parent=1 // pred_check_branch
      %47 = sbr.rel (0) target = $region25
    $region24: #{tpu_custom_call.1} parent=1 // pred_region
      _
    $region25: #{tpu_custom_call.1} parent=1 // pred_fallthru
      _
    // Predicated region
    $region26: #{tpu_custom_call.1} parent=1 // pred_check
      _
    $region27: #{tpu_custom_call.1} parent=1 // pred_check_branch
      %49 = sbr.rel (0) target = $region29
    $region28: #{tpu_custom_call.1} parent=1 // pred_region
      %s51 = ssub.s32 256, 256
      %52 = vsyncadd [#allocation6], %s51
      %s53 = sshll.u32 [#allocation5], 4
      %s54 = int_to_ptr.vmem [resolvable:$true] %s53
      %59 = dma.hbm_to_vmem [thread:$0]  %s6, 256, %s54, [#allocation6], 64, 64, 4
    $region29: #{tpu_custom_call.1} parent=1 // pred_fallthru
      _
    // Predicated region
    $region30: #{tpu_custom_call.1} parent=1 // pred_check
      _
    $region31: #{tpu_custom_call.1} parent=1 // pred_check_branch
      %61 = sbr.rel (0) target = $region33
    $region32: #{tpu_custom_call.1} parent=1 // pred_region
      %s63 = ssub.s32 16, 16
      %64 = vsyncadd [#allocation6], %s63
      %s66 = sshll.u32 [#allocation7], 4
      %s67 = int_to_ptr.vmem [resolvable:$true] %s66
      %69 = dma.hbm_to_vmem [thread:$0]  %s7, 16, %s67, [#allocation6]
    $region33: #{tpu_custom_call.1} parent=1 // pred_fallthru
      _
    // Predicated region
    $region34: #{tpu_custom_call.1} parent=1 // pred_check
      _
    $region35: #{tpu_custom_call.1} parent=1 // pred_check_branch
      %71 = sbr.rel (0) target = $region37
    $region36: #{tpu_custom_call.1} parent=1 // pred_region
      %s73 = ssub.s32 256, 256
      %74 = vsyncadd [#allocation9], %s73
      %s75 = sshll.u32 [#allocation8], 4
      %s76 = int_to_ptr.vmem [resolvable:$true] %s75
      %81 = dma.hbm_to_vmem [thread:$0]  %s8, 256, %s76, [#allocation9], 64, 64, 4
    $region37: #{tpu_custom_call.1} parent=1 // pred_fallthru
      _
    // Predicated region
    $region38: #{tpu_custom_call.1} parent=1 // pred_check
      _
    $region39: #{tpu_custom_call.1} parent=1 // pred_check_branch
      %83 = sbr.rel (0) target = $region41
    $region40: #{tpu_custom_call.1} parent=1 // pred_region
      %s85 = ssub.s32 16, 16
      %86 = vsyncadd [#allocation9], %s85
      %s88 = sshll.u32 [#allocation10], 4
      %s89 = int_to_ptr.vmem [resolvable:$true] %s88
      %91 = dma.hbm_to_vmem [thread:$0]  %s9, 16, %s89, [#allocation9]
    $region41: #{tpu_custom_call.1} parent=1 // pred_fallthru
      _
    // Predicated region
    $region42: #{tpu_custom_call.1} parent=1 // pred_check
      _
    $region43: #{tpu_custom_call.1} parent=1 // pred_check_branch
      %93 = sbr.rel (0) target = $region45
    $region44: #{tpu_custom_call.1} parent=1 // pred_region
      _
    $region45: #{tpu_custom_call.1} parent=1 // pred_fallthru
      _
    // Predicated region
    $region46: #{tpu_custom_call.1} parent=1 // pred_check
      _
    $region47: #{tpu_custom_call.1} parent=1 // pred_check_branch
      %95 = sbr.rel (0) target = $region49
    $region48: #{tpu_custom_call.1} parent=1 // pred_region
      _
    $region49: #{tpu_custom_call.1} parent=1 // pred_fallthru
      _
    // Predicated region
    $region50: #{tpu_custom_call.1} parent=1 // pred_check
      _
    $region51: #{tpu_custom_call.1} parent=1 // pred_check_branch
      %97 = sbr.rel (0) target = $region53
    $region52: #{tpu_custom_call.1} parent=1 // pred_region
      %s99 = ssub.s32 256, 256
      %100 = vsyncadd [#allocation12], %s99
      %s101 = sshll.u32 [#allocation11], 4
      %s102 = int_to_ptr.vmem [resolvable:$true] %s101
      %107 = dma.hbm_to_vmem [thread:$0]  %s12, 256, %s102, [#allocation12], 64, 64, 4
    $region53: #{tpu_custom_call.1} parent=1 // pred_fallthru
      _
    // Predicated region
    $region54: #{tpu_custom_call.1} parent=1 // pred_check
      _
    $region55: #{tpu_custom_call.1} parent=1 // pred_check_branch
      %109 = sbr.rel (0) target = $region57
    $region56: #{tpu_custom_call.1} parent=1 // pred_region
      _
    $region57: #{tpu_custom_call.1} parent=1 // pred_fallthru
      _
    // Predicated region
    $region58: #{tpu_custom_call.1} parent=1 // pred_check
      _
    $region59: #{tpu_custom_call.1} parent=1 // pred_check_branch
      %111 = sbr.rel (0) target = $region61
    $region60: #{tpu_custom_call.1} parent=1 // pred_region
      _
    $region61: #{tpu_custom_call.1} parent=1 // pred_fallthru
      _
    // Predicated region
    $region62: #{tpu_custom_call.1} parent=1 // pred_check
      _
    $region63: #{tpu_custom_call.1} parent=1 // pred_check_branch
      %113 = sbr.rel (0) target = $region65
    $region64: #{tpu_custom_call.1} parent=1 // pred_region
      _
    $region65: #{tpu_custom_call.1} parent=1 // pred_fallthru
      _
    // Predicated region
    $region66: #{tpu_custom_call.1} parent=1 // pred_check
      _
    $region67: #{tpu_custom_call.1} parent=1 // pred_check_branch
      %115 = sbr.rel (0) target = $region69
    $region68: #{tpu_custom_call.1} parent=1 // pred_region
      %116 = dma.done [#allocation3], 512
    $region69: #{tpu_custom_call.1} parent=1 // pred_fallthru
      _
    // Predicated region
    $region70: #{tpu_custom_call.1} parent=1 // pred_check
      _
    $region71: #{tpu_custom_call.1} parent=1 // pred_check_branch
      %118 = sbr.rel (0) target = $region73
    $region72: #{tpu_custom_call.1} parent=1 // pred_region
      %119 = dma.done [#allocation6], 256
    $region73: #{tpu_custom_call.1} parent=1 // pred_fallthru
      _
    // Predicated region
    $region74: #{tpu_custom_call.1} parent=1 // pred_check
      _
    $region75: #{tpu_custom_call.1} parent=1 // pred_check_branch
      %121 = sbr.rel (0) target = $region77
    $region76: #{tpu_custom_call.1} parent=1 // pred_region
      %122 = dma.done [#allocation6], 16
    $region77: #{tpu_custom_call.1} parent=1 // pred_fallthru
      _
    // Predicated region
    $region78: #{tpu_custom_call.1} parent=1 // pred_check
      _
    $region79: #{tpu_custom_call.1} parent=1 // pred_check_branch
      %124 = sbr.rel (0) target = $region81
    $region80: #{tpu_custom_call.1} parent=1 // pred_region
      %125 = dma.done [#allocation9], 256
    $region81: #{tpu_custom_call.1} parent=1 // pred_fallthru
      _
    // Predicated region
    $region82: #{tpu_custom_call.1} parent=1 // pred_check
      _
    $region83: #{tpu_custom_call.1} parent=1 // pred_check_branch
      %127 = sbr.rel (0) target = $region85
    $region84: #{tpu_custom_call.1} parent=1 // pred_region
      %128 = dma.done [#allocation9], 16
    $region85: #{tpu_custom_call.1} parent=1 // pred_fallthru
      _
    // Predicated region
    $region86: #{tpu_custom_call.1} parent=1 // pred_check
      _
    $region87: #{tpu_custom_call.1} parent=1 // pred_check_branch
      %130 = sbr.rel (0) target = $region89
    $region88: #{tpu_custom_call.1} parent=1 // pred_region
      %131 = dma.done [#allocation12], 256
    $region89: #{tpu_custom_call.1} parent=1 // pred_fallthru
      _
    %v133 = vld [vmem:[%s0] sm:$0xff]
    %v134 = vld [vmem:[%s0 + $0x8] sm:$0xff]
    %v135 = vld [vmem:[%s0 + $0x10] sm:$0xff]
    %v136 = vld [vmem:[%s0 + $0x18] sm:$0xff]
    %v137 = vld [vmem:[%s1] sm:$0x1]
    %v138 = vld [vmem:[%s2] sm:$0x1]
    %vm139 = vcmask 261120
    %v140 = vsel %vm139, %v133, 0.0
    %141 = vadd.xlane.f32.xlu0 %v140
    %v142 = vpop.xlane.xlu0 %141
    %v143 = vsel %vm139, %v134, 0.0
    %144 = vadd.xlane.f32.xlu0 %v143
    %v145 = vpop.xlane.xlu0 %144
    %v146 = vsel %vm139, %v135, 0.0
    %147 = vadd.xlane.f32.xlu0 %v146
    %v148 = vpop.xlane.xlu0 %147
    %v149 = vsel %vm139, %v136, 0.0
    %150 = vadd.xlane.f32.xlu0 %v149
    %v151 = vpop.xlane.xlu0 %150
    %v152 = vrcp.pop 32.0
    %v153 = vmul.f32 %v142, %v152
    %v154 = vmul.f32 %v145, %v152
    %v155 = vmul.f32 %v148, %v152
    %v156 = vmul.f32 %v151, %v152
    %v157 = vsub.f32 %v133, %v153
    %v158 = vsub.f32 %v134, %v154
    %v159 = vsub.f32 %v135, %v155
    %v160 = vsub.f32 %v136, %v156
    %v161 = vmul.f32 %v157, %v157
    %v162 = vmul.f32 %v158, %v158
    %v163 = vmul.f32 %v159, %v159
    %v164 = vmul.f32 %v160, %v160
    %v165 = vsel %vm139, %v161, 0.0
    %166 = vadd.xlane.f32.xlu0 %v165
    %v167 = vpop.xlane.xlu0 %166
    %v168 = vsel %vm139, %v162, 0.0
    %169 = vadd.xlane.f32.xlu0 %v168
    %v170 = vpop.xlane.xlu0 %169
    %v171 = vsel %vm139, %v163, 0.0
    %172 = vadd.xlane.f32.xlu0 %v171
    %v173 = vpop.xlane.xlu0 %172
    %v174 = vsel %vm139, %v164, 0.0
    %175 = vadd.xlane.f32.xlu0 %v174
    %v176 = vpop.xlane.xlu0 %175
    %v177 = vmul.f32 %v167, %v152
    %v178 = vmul.f32 %v170, %v152
    %v179 = vmul.f32 %v173, %v152
    %v180 = vmul.f32 %v176, %v152
    %v181 = vadd.f32 %v177, 1e-05
    %v182 = vadd.f32 %v178, 1e-05
    %v183 = vadd.f32 %v179, 1e-05
    %v184 = vadd.f32 %v180, 1e-05
    %v185 = vrsqrt.pop %v181
    %v186 = vrsqrt.pop %v182
    %v187 = vrsqrt.pop %v183
    %v188 = vrsqrt.pop %v184
    %v189 = vmul.f32 %v157, %v185
    %v190 = vmul.f32 %v158, %v186
    %v191 = vmul.f32 %v159, %v187
    %v192 = vmul.f32 %v160, %v188
    %v194 = vlaneseq
    %v195 = vshrl.u32 %v194, 7
    %v196 = vsub.s32 0, %v195
    %v197 = vrot.slane %v137, %v196
    %v199 = vmul.f32 %v189, %v197
    %v200 = vmul.f32 %v190, %v197
    %v201 = vmul.f32 %v191, %v197
    %v202 = vmul.f32 %v192, %v197
    %v204 = vlaneseq
    %v205 = vshrl.u32 %v204, 7
    %v206 = vsub.s32 0, %v205
    %v207 = vrot.slane %v138, %v206
    %v209 = vadd.f32 %v199, %v207
    %v210 = vadd.f32 %v200, %v207
    %v211 = vadd.f32 %v201, %v207
    %v212 = vadd.f32 %v202, %v207
    %217 = vrot.lane.b32.xlu0 %v209, 112
    %v218 = vpop.permute.xlu0 %217
    %219 = vrot.lane.b32.xlu0 %v210, 112
    %v220 = vpop.permute.xlu0 %219
    %221 = vrot.lane.b32.xlu0 %v211, 112
    %v222 = vpop.permute.xlu0 %221
    %223 = vrot.lane.b32.xlu0 %v212, 112
    %v224 = vpop.permute.xlu0 %223
    %229 = vrot.lane.b32.xlu0 %v209, 16
    %v230 = vpop.permute.xlu0 %229
    %231 = vrot.lane.b32.xlu0 %v210, 16
    %v232 = vpop.permute.xlu0 %231
    %233 = vrot.lane.b32.xlu0 %v211, 16
    %v234 = vpop.permute.xlu0 %233
    %235 = vrot.lane.b32.xlu0 %v212, 16
    %v236 = vpop.permute.xlu0 %235
    %vm241 = vcmask 130048
    %v242 = vsel %vm241, %v218, %v230
    %v243 = vsel %vm241, %v220, %v232
    %v244 = vsel %vm241, %v222, %v234
    %v245 = vsel %vm241, %v224, %v236
    %v246 = vld [vmem:[%s3] sm:$0xff]
    %v247 = vld [vmem:[%s3 + $0x8] sm:$0xff]
    %v248 = vld [vmem:[%s3 + $0x10] sm:$0xff]
    %v249 = vld [vmem:[%s3 + $0x18] sm:$0xff]
    %v250 = vmul.f32 %v209, %v246
    %v251 = vmul.f32 %v210, %v247
    %v252 = vmul.f32 %v211, %v248
    %v253 = vmul.f32 %v212, %v249
    %v254 = vld [vmem:[#allocation2] sm:$0xff]
    %v255 = vld [vmem:[#allocation2 + $0x8] sm:$0xff]
    %v256 = vld [vmem:[#allocation2 + $0x10] sm:$0xff]
    %v257 = vld [vmem:[#allocation2 + $0x18] sm:$0xff]
    %v258 = vmul.f32 %v242, %v254
    %v259 = vmul.f32 %v243, %v255
    %v260 = vmul.f32 %v244, %v256
    %v261 = vmul.f32 %v245, %v257
    %v262 = vadd.f32 %v250, %v258
    %v263 = vadd.f32 %v251, %v259
    %v264 = vadd.f32 %v252, %v260
    %v265 = vadd.f32 %v253, %v261
    %v266 = vpack.c.bf16 %v263, %v262
    %v267 = vpack.c.bf16 %v265, %v264
    %v268 = vld [vmem:[#allocation5] sm:$0xf]
    %v269 = vld [vmem:[#allocation5 + $0x4] sm:$0xf]
    %v270 = vld [vmem:[#allocation5 + $0x8] sm:$0xf]
    %v271 = vld [vmem:[#allocation5 + $0xc] sm:$0xf]
    %v272 = vld [vmem:[#allocation7] sm:$0x1]
    %v274 = vlaneseq
    %v275 = vshrl.u32 %v274, 7
    %v276 = vsub.s32 0, %v275
    %v277 = vrot.slane %v272, %v276
    %v283 = vunpack.c.l.b16 %v268
    %v284 = vunpack.c.l.b16 %v269
    %v285 = vunpack.c.l.b16 %v270
    %v286 = vunpack.c.l.b16 %v271
    %v287 = vpack.c.b16 %v284, %v283
    %v288 = vpack.c.b16 %v286, %v285
    %v292 = vsel %vm139, %v266, 0
    %v295 = vsel %vm139, %v267, 0
    %297 = vmatprep.subr.bf16.mxu0 0
    %298 = vmatpush1.bf16.msra.mxu0 %v287
    %299 = vmatprep.subr.bf16.mxu0 0
    %300 = vmatpush1.bf16.msra.mxu0 %v288
    %301 = vmatprep.subr.bf16.mxu0 0
    %302 = vmatpush1.bf16.msra.mxu0 0
    %303 = vmatprep.subr.bf16.mxu0 0
    %304 = vmatpush1.bf16.msra.mxu0 0
    %305 = vmatprep.subr.bf16.mxu0 0
    %306 = vmatpush1.bf16.msra.mxu0 0
    %307 = vmatprep.subr.bf16.mxu0 0
    %308 = vmatpush1.bf16.msra.mxu0 0
    %309 = vmatprep.subr.bf16.mxu0 0
    %310 = vmatpush1.bf16.msra.mxu0 0
    %311 = vmatprep.subr.bf16.mxu0 0
    %312 = vmatpush1.bf16.msra.mxu0 0
    %313 = vmatprep.subr.bf16.mxu0 0
    %314 = vmatpush1.bf16.msra.mxu0 0
    %315 = vmatprep.subr.bf16.mxu0 0
    %316 = vmatpush1.bf16.msra.mxu0 0
    %317 = vmatprep.subr.bf16.mxu0 0
    %318 = vmatpush1.bf16.msra.mxu0 0
    %319 = vmatprep.subr.bf16.mxu0 0
    %320 = vmatpush1.bf16.msra.mxu0 0
    %321 = vmatprep.subr.bf16.mxu0 0
    %322 = vmatpush1.bf16.msra.mxu0 0
    %323 = vmatprep.subr.bf16.mxu0 0
    %324 = vmatpush1.bf16.msra.mxu0 0
    %325 = vmatprep.subr.bf16.mxu0 0
    %326 = vmatpush1.bf16.msra.mxu0 0
    %327 = vmatprep.subr.bf16.mxu0 0
    %328 = vmatpush1.bf16.msra.mxu0 0
    %329 = vmatprep.mubr.bf16.mxu0 0
    %330 = vmatmul.mubr.bf16.gmra.mrb[0].mxu0 %v292
    %v331 = vpop.f32.mrb[0].mxu0
    %v332 = vadd.f32 %v277, %v331
    %v333 = vpop.f32.mrb[0].mxu0
    %v334 = vpop.f32.mrb[0].mxu0
    %v335 = vadd.f32 %v277, %v334
    %v336 = vpop.f32.mrb[0].mxu0
    %337 = vmatprep.mubr.bf16.mxu0 0
    %338 = vmatmul.mubr.bf16.gmra.mrb[0].mxu0 %v295
    %v339 = vpop.f32.mrb[0].mxu0
    %v340 = vadd.f32 %v277, %v339
    %v341 = vpop.f32.mrb[0].mxu0
    %v342 = vpop.f32.mrb[0].mxu0
    %v343 = vadd.f32 %v277, %v342
    %v344 = vpop.f32.mrb[0].mxu0
    %345 = vdwg.mxu0
    %v346 = vmul.f32 %v332, 0.35355338
    %v347 = vmul.f32 %v335, 0.35355338
    %v348 = vmul.f32 %v340, 0.35355338
    %v349 = vmul.f32 %v343, 0.35355338
    %v350 = vpack.c.bf16 %v347, %v346
    %v351 = vpack.c.bf16 %v349, %v348
    %v352 = vpack.c.bf16 %v335, %v332
    %v353 = vpack.c.bf16 %v343, %v340
    %v354 = vld [vmem:[%s5] sm:$0xff]
    %v355 = vld [vmem:[%s5 + $0x8] sm:$0xff]
    %v356 = vld [vmem:[%s5 + $0x10] sm:$0xff]
    %v357 = vld [vmem:[%s5 + $0x18] sm:$0xff]
    %360 = vrot.lane.b32.xlu0 %v352, 96
    %v361 = vpop.permute.xlu0 %360
    %362 = vrot.lane.b32.xlu0 %v353, 96
    %v363 = vpop.permute.xlu0 %362
    %vm364 = vcmask 64512
    %v366 = vsel %vm364, %v350, 0
    %v369 = vsel %vm364, %v351, 0
    %v372 = vsel %vm364, %v361, 0
    %v375 = vsel %vm364, %v363, 0
    %377 = vmatprep.subr.bf16.mxu0 0
    %378 = vmatpush1.bf16.xpose.msra.mxu0 %v372
    %379 = vmatprep.subr.bf16.mxu0 0
    %380 = vmatpush1.bf16.xpose.msra.mxu0 %v375
    %381 = vmatprep.subr.bf16.mxu0 0
    %382 = vmatpush1.bf16.xpose.msra.mxu0 0
    %383 = vmatprep.subr.bf16.mxu0 0
    %384 = vmatpush1.bf16.xpose.msra.mxu0 0
    %385 = vmatprep.subr.bf16.mxu0 0
    %386 = vmatpush1.bf16.xpose.msra.mxu0 0
    %387 = vmatprep.subr.bf16.mxu0 0
    %388 = vmatpush1.bf16.xpose.msra.mxu0 0
    %389 = vmatprep.subr.bf16.mxu0 0
    %390 = vmatpush1.bf16.xpose.msra.mxu0 0
    %391 = vmatprep.subr.bf16.mxu0 0
    %392 = vmatpush1.bf16.xpose.msra.mxu0 0
    %393 = vmatprep.subr.bf16.mxu0 0
    %394 = vmatpush1.bf16.xpose.msra.mxu0 0
    %395 = vmatprep.subr.bf16.mxu0 0
    %396 = vmatpush1.bf16.xpose.msra.mxu0 0
    %397 = vmatprep.subr.bf16.mxu0 0
    %398 = vmatpush1.bf16.xpose.msra.mxu0 0
    %399 = vmatprep.subr.bf16.mxu0 0
    %400 = vmatpush1.bf16.xpose.msra.mxu0 0
    %401 = vmatprep.subr.bf16.mxu0 0
    %402 = vmatpush1.bf16.xpose.msra.mxu0 0
    %403 = vmatprep.subr.bf16.mxu0 0
    %404 = vmatpush1.bf16.xpose.msra.mxu0 0
    %405 = vmatprep.subr.bf16.mxu0 0
    %406 = vmatpush1.bf16.xpose.msra.mxu0 0
    %407 = vmatprep.subr.bf16.mxu0 0
    %408 = vmatpush1.bf16.xpose.msra.mxu0 0
    %409 = vmatprep.mubr.bf16.mxu0 0
    %410 = vmatmul.mubr.bf16.gmra.mrb[0].mxu0 %v366
    %v411 = vpop.f32.mrb[0].mxu0
    %v412 = vadd.f32 %v354, %v411
    %v413 = vpop.f32.mrb[0].mxu0
    %v414 = vpop.f32.mrb[0].mxu0
    %v415 = vadd.f32 %v355, %v414
    %v416 = vpop.f32.mrb[0].mxu0
    %417 = vmatprep.mubr.bf16.mxu0 0
    %418 = vmatmul.mubr.bf16.gmra.mrb[0].mxu0 %v369
    %v419 = vpop.f32.mrb[0].mxu0
    %v420 = vadd.f32 %v356, %v419
    %v421 = vpop.f32.mrb[0].mxu0
    %v422 = vpop.f32.mrb[0].mxu0
    %v423 = vadd.f32 %v357, %v422
    %v424 = vpop.f32.mrb[0].mxu0
    %425 = vdwg.mxu0
    %v426 = vsel %vm139, %v412, -inf
    %427 = vmax.xlane.f32.xlu0 %v426
    %v428 = vpop.xlane.xlu0 %427
    %v429 = vsel %vm139, %v415, -inf
    %430 = vmax.xlane.f32.xlu0 %v429
    %v431 = vpop.xlane.xlu0 %430
    %v432 = vsel %vm139, %v420, -inf
    %433 = vmax.xlane.f32.xlu0 %v432
    %v434 = vpop.xlane.xlu0 %433
    %v435 = vsel %vm139, %v423, -inf
    %436 = vmax.xlane.f32.xlu0 %v435
    %v437 = vpop.xlane.xlu0 %436
    %v438 = vsub.f32 %v412, %v428
    %v439 = vsub.f32 %v415, %v431
    %v440 = vsub.f32 %v420, %v434
    %v441 = vsub.f32 %v423, %v437
    %v442 = vmul.f32 %v438, 1.442695
    %v443 = vpow.pop %v442
    %v444 = vmul.f32 %v439, 1.442695
    %v445 = vpow.pop %v444
    %v446 = vmul.f32 %v440, 1.442695
    %v447 = vpow.pop %v446
    %v448 = vmul.f32 %v441, 1.442695
    %v449 = vpow.pop %v448
    %v450 = vsel %vm139, %v443, 0.0
    %451 = vadd.xlane.f32.xlu0 %v450
    %v452 = vpop.xlane.xlu0 %451
    %v453 = vsel %vm139, %v445, 0.0
    %454 = vadd.xlane.f32.xlu0 %v453
    %v455 = vpop.xlane.xlu0 %454
    %v456 = vsel %vm139, %v447, 0.0
    %457 = vadd.xlane.f32.xlu0 %v456
    %v458 = vpop.xlane.xlu0 %457
    %v459 = vsel %vm139, %v449, 0.0
    %460 = vadd.xlane.f32.xlu0 %v459
    %v461 = vpop.xlane.xlu0 %460
    %v462 = vrcp.pop %v452
    %v463 = vmul.f32 %v443, %v462
    %v464 = vrcp.pop %v455
    %v465 = vmul.f32 %v445, %v464
    %v466 = vrcp.pop %v458
    %v467 = vmul.f32 %v447, %v466
    %v468 = vrcp.pop %v461
    %v469 = vmul.f32 %v449, %v468
    %v470 = vpack.c.bf16 %v465, %v463
    %v471 = vpack.c.bf16 %v469, %v467
    %472 = vrot.lane.b32.xlu0 %v352, 64
    %v473 = vpop.permute.xlu0 %472
    %474 = vrot.lane.b32.xlu0 %v353, 64
    %v475 = vpop.permute.xlu0 %474
    %v479 = vsel %vm139, %v470, 0
    %v482 = vsel %vm139, %v471, 0
    %484 = vmatprep.subr.bf16.mxu0 0
    %485 = vmatpush1.bf16.msra.mxu0 %v473
    %486 = vmatprep.subr.bf16.mxu0 0
    %487 = vmatpush1.bf16.msra.mxu0 %v475
    %488 = vmatprep.subr.bf16.mxu0 0
    %489 = vmatpush1.bf16.msra.mxu0 0
    %490 = vmatprep.subr.bf16.mxu0 0
    %491 = vmatpush1.bf16.msra.mxu0 0
    %492 = vmatprep.subr.bf16.mxu0 0
    %493 = vmatpush1.bf16.msra.mxu0 0
    %494 = vmatprep.subr.bf16.mxu0 0
    %495 = vmatpush1.bf16.msra.mxu0 0
    %496 = vmatprep.subr.bf16.mxu0 0
    %497 = vmatpush1.bf16.msra.mxu0 0
    %498 = vmatprep.subr.bf16.mxu0 0
    %499 = vmatpush1.bf16.msra.mxu0 0
    %500 = vmatprep.subr.bf16.mxu0 0
    %501 = vmatpush1.bf16.msra.mxu0 0
    %502 = vmatprep.subr.bf16.mxu0 0
    %503 = vmatpush1.bf16.msra.mxu0 0
    %504 = vmatprep.subr.bf16.mxu0 0
    %505 = vmatpush1.bf16.msra.mxu0 0
    %506 = vmatprep.subr.bf16.mxu0 0
    %507 = vmatpush1.bf16.msra.mxu0 0
    %508 = vmatprep.subr.bf16.mxu0 0
    %509 = vmatpush1.bf16.msra.mxu0 0
    %510 = vmatprep.subr.bf16.mxu0 0
    %511 = vmatpush1.bf16.msra.mxu0 0
    %512 = vmatprep.subr.bf16.mxu0 0
    %513 = vmatpush1.bf16.msra.mxu0 0
    %514 = vmatprep.subr.bf16.mxu0 0
    %515 = vmatpush1.bf16.msra.mxu0 0
    %516 = vmatprep.mubr.bf16.mxu0 0
    %517 = vmatmul.mubr.bf16.gmra.mrb[0].mxu0 %v479
    %v518 = vpop.f32.mrb[0].mxu0
    %v519 = vadd.f32 0.0, %v518
    %v520 = vpop.f32.mrb[0].mxu0
    %v521 = vpop.f32.mrb[0].mxu0
    %v522 = vadd.f32 0.0, %v521
    %v523 = vpop.f32.mrb[0].mxu0
    %524 = vmatprep.mubr.bf16.mxu0 0
    %525 = vmatmul.mubr.bf16.gmra.mrb[0].mxu0 %v482
    %v526 = vpop.f32.mrb[0].mxu0
    %v527 = vadd.f32 0.0, %v526
    %v528 = vpop.f32.mrb[0].mxu0
    %v529 = vpop.f32.mrb[0].mxu0
    %v530 = vadd.f32 0.0, %v529
    %v531 = vpop.f32.mrb[0].mxu0
    %532 = vdwg.mxu0
    %535 = vrot.lane.b32.xlu0 %v350, 120
    %v536 = vpop.permute.xlu0 %535
    %537 = vrot.lane.b32.xlu0 %v351, 120
    %v538 = vpop.permute.xlu0 %537
    %539 = vrot.lane.b32.xlu0 %v352, 88
    %v540 = vpop.permute.xlu0 %539
    %541 = vrot.lane.b32.xlu0 %v353, 88
    %v542 = vpop.permute.xlu0 %541
    %v544 = vsel %vm364, %v536, 0
    %v547 = vsel %vm364, %v538, 0
    %v550 = vsel %vm364, %v540, 0
    %v553 = vsel %vm364, %v542, 0
    %555 = vmatprep.subr.bf16.mxu0 0
    %556 = vmatpush1.bf16.xpose.msra.mxu0 %v550
    %557 = vmatprep.subr.bf16.mxu0 0
    %558 = vmatpush1.bf16.xpose.msra.mxu0 %v553
    %559 = vmatprep.subr.bf16.mxu0 0
    %560 = vmatpush1.bf16.xpose.msra.mxu0 0
    %561 = vmatprep.subr.bf16.mxu0 0
    %562 = vmatpush1.bf16.xpose.msra.mxu0 0
    %563 = vmatprep.subr.bf16.mxu0 0
    %564 = vmatpush1.bf16.xpose.msra.mxu0 0
    %565 = vmatprep.subr.bf16.mxu0 0
    %566 = vmatpush1.bf16.xpose.msra.mxu0 0
    %567 = vmatprep.subr.bf16.mxu0 0
    %568 = vmatpush1.bf16.xpose.msra.mxu0 0
    %569 = vmatprep.subr.bf16.mxu0 0
    %570 = vmatpush1.bf16.xpose.msra.mxu0 0
    %571 = vmatprep.subr.bf16.mxu0 0
    %572 = vmatpush1.bf16.xpose.msra.mxu0 0
    %573 = vmatprep.subr.bf16.mxu0 0
    %574 = vmatpush1.bf16.xpose.msra.mxu0 0
    %575 = vmatprep.subr.bf16.mxu0 0
    %576 = vmatpush1.bf16.xpose.msra.mxu0 0
    %577 = vmatprep.subr.bf16.mxu0 0
    %578 = vmatpush1.bf16.xpose.msra.mxu0 0
    %579 = vmatprep.subr.bf16.mxu0 0
    %580 = vmatpush1.bf16.xpose.msra.mxu0 0
    %581 = vmatprep.subr.bf16.mxu0 0
    %582 = vmatpush1.bf16.xpose.msra.mxu0 0
    %583 = vmatprep.subr.bf16.mxu0 0
    %584 = vmatpush1.bf16.xpose.msra.mxu0 0
    %585 = vmatprep.subr.bf16.mxu0 0
    %586 = vmatpush1.bf16.xpose.msra.mxu0 0
    %587 = vmatprep.mubr.bf16.mxu0 0
    %588 = vmatmul.mubr.bf16.gmra.mrb[0].mxu0 %v544
    %v589 = vpop.f32.mrb[0].mxu0
    %v590 = vadd.f32 %v354, %v589
    %v591 = vpop.f32.mrb[0].mxu0
    %v592 = vpop.f32.mrb[0].mxu0
    %v593 = vadd.f32 %v355, %v592
    %v594 = vpop.f32.mrb[0].mxu0
    %595 = vmatprep.mubr.bf16.mxu0 0
    %596 = vmatmul.mubr.bf16.gmra.mrb[0].mxu0 %v547
    %v597 = vpop.f32.mrb[0].mxu0
    %v598 = vadd.f32 %v356, %v597
    %v599 = vpop.f32.mrb[0].mxu0
    %v600 = vpop.f32.mrb[0].mxu0
    %v601 = vadd.f32 %v357, %v600
    %v602 = vpop.f32.mrb[0].mxu0
    %603 = vdwg.mxu0
    %v604 = vsel %vm139, %v590, -inf
    %605 = vmax.xlane.f32.xlu0 %v604
    %v606 = vpop.xlane.xlu0 %605
    %v607 = vsel %vm139, %v593, -inf
    %608 = vmax.xlane.f32.xlu0 %v607
    %v609 = vpop.xlane.xlu0 %608
    %v610 = vsel %vm139, %v598, -inf
    %611 = vmax.xlane.f32.xlu0 %v610
    %v612 = vpop.xlane.xlu0 %611
    %v613 = vsel %vm139, %v601, -inf
    %614 = vmax.xlane.f32.xlu0 %v613
    %v615 = vpop.xlane.xlu0 %614
    %v616 = vsub.f32 %v590, %v606
    %v617 = vsub.f32 %v593, %v609
    %v618 = vsub.f32 %v598, %v612
    %v619 = vsub.f32 %v601, %v615
    %v620 = vmul.f32 %v616, 1.442695
    %v621 = vpow.pop %v620
    %v622 = vmul.f32 %v617, 1.442695
    %v623 = vpow.pop %v622
    %v624 = vmul.f32 %v618, 1.442695
    %v625 = vpow.pop %v624
    %v626 = vmul.f32 %v619, 1.442695
    %v627 = vpow.pop %v626
    %v628 = vsel %vm139, %v621, 0.0
    %629 = vadd.xlane.f32.xlu0 %v628
    %v630 = vpop.xlane.xlu0 %629
    %v631 = vsel %vm139, %v623, 0.0
    %632 = vadd.xlane.f32.xlu0 %v631
    %v633 = vpop.xlane.xlu0 %632
    %v634 = vsel %vm139, %v625, 0.0
    %635 = vadd.xlane.f32.xlu0 %v634
    %v636 = vpop.xlane.xlu0 %635
    %v637 = vsel %vm139, %v627, 0.0
    %638 = vadd.xlane.f32.xlu0 %v637
    %v639 = vpop.xlane.xlu0 %638
    %v640 = vrcp.pop %v630
    %v641 = vmul.f32 %v621, %v640
    %v642 = vrcp.pop %v633
    %v643 = vmul.f32 %v623, %v642
    %v644 = vrcp.pop %v636
    %v645 = vmul.f32 %v625, %v644
    %v646 = vrcp.pop %v639
    %v647 = vmul.f32 %v627, %v646
    %v648 = vpack.c.bf16 %v643, %v641
    %v649 = vpack.c.bf16 %v647, %v645
    %650 = vrot.lane.b32.xlu0 %v352, 56
    %v651 = vpop.permute.xlu0 %650
    %652 = vrot.lane.b32.xlu0 %v353, 56
    %v653 = vpop.permute.xlu0 %652
    %v657 = vsel %vm139, %v648, 0
    %v660 = vsel %vm139, %v649, 0
    %662 = vmatprep.subr.bf16.mxu0 0
    %663 = vmatpush1.bf16.msra.mxu0 %v651
    %664 = vmatprep.subr.bf16.mxu0 0
    %665 = vmatpush1.bf16.msra.mxu0 %v653
    %666 = vmatprep.subr.bf16.mxu0 0
    %667 = vmatpush1.bf16.msra.mxu0 0
    %668 = vmatprep.subr.bf16.mxu0 0
    %669 = vmatpush1.bf16.msra.mxu0 0
    %670 = vmatprep.subr.bf16.mxu0 0
    %671 = vmatpush1.bf16.msra.mxu0 0
    %672 = vmatprep.subr.bf16.mxu0 0
    %673 = vmatpush1.bf16.msra.mxu0 0
    %674 = vmatprep.subr.bf16.mxu0 0
    %675 = vmatpush1.bf16.msra.mxu0 0
    %676 = vmatprep.subr.bf16.mxu0 0
    %677 = vmatpush1.bf16.msra.mxu0 0
    %678 = vmatprep.subr.bf16.mxu0 0
    %679 = vmatpush1.bf16.msra.mxu0 0
    %680 = vmatprep.subr.bf16.mxu0 0
    %681 = vmatpush1.bf16.msra.mxu0 0
    %682 = vmatprep.subr.bf16.mxu0 0
    %683 = vmatpush1.bf16.msra.mxu0 0
    %684 = vmatprep.subr.bf16.mxu0 0
    %685 = vmatpush1.bf16.msra.mxu0 0
    %686 = vmatprep.subr.bf16.mxu0 0
    %687 = vmatpush1.bf16.msra.mxu0 0
    %688 = vmatprep.subr.bf16.mxu0 0
    %689 = vmatpush1.bf16.msra.mxu0 0
    %690 = vmatprep.subr.bf16.mxu0 0
    %691 = vmatpush1.bf16.msra.mxu0 0
    %692 = vmatprep.subr.bf16.mxu0 0
    %693 = vmatpush1.bf16.msra.mxu0 0
    %694 = vmatprep.mubr.bf16.mxu0 0
    %695 = vmatmul.mubr.bf16.gmra.mrb[0].mxu0 %v657
    %v696 = vpop.f32.mrb[0].mxu0
    %v697 = vadd.f32 0.0, %v696
    %v698 = vpop.f32.mrb[0].mxu0
    %v699 = vpop.f32.mrb[0].mxu0
    %v700 = vadd.f32 0.0, %v699
    %v701 = vpop.f32.mrb[0].mxu0
    %702 = vmatprep.mubr.bf16.mxu0 0
    %703 = vmatmul.mubr.bf16.gmra.mrb[0].mxu0 %v660
    %v704 = vpop.f32.mrb[0].mxu0
    %v705 = vadd.f32 0.0, %v704
    %v706 = vpop.f32.mrb[0].mxu0
    %v707 = vpop.f32.mrb[0].mxu0
    %v708 = vadd.f32 0.0, %v707
    %v709 = vpop.f32.mrb[0].mxu0
    %710 = vdwg.mxu0
    %711 = vrot.lane.b32.xlu0 %v350, 112
    %v712 = vpop.permute.xlu0 %711
    %713 = vrot.lane.b32.xlu0 %v351, 112
    %v714 = vpop.permute.xlu0 %713
    %715 = vrot.lane.b32.xlu0 %v352, 80
    %v716 = vpop.permute.xlu0 %715
    %717 = vrot.lane.b32.xlu0 %v353, 80
    %v718 = vpop.permute.xlu0 %717
    %v720 = vsel %vm364, %v712, 0
    %v723 = vsel %vm364, %v714, 0
    %v726 = vsel %vm364, %v716, 0
    %v729 = vsel %vm364, %v718, 0
    %731 = vmatprep.subr.bf16.mxu0 0
    %732 = vmatpush1.bf16.xpose.msra.mxu0 %v726
    %733 = vmatprep.subr.bf16.mxu0 0
    %734 = vmatpush1.bf16.xpose.msra.mxu0 %v729
    %735 = vmatprep.subr.bf16.mxu0 0
    %736 = vmatpush1.bf16.xpose.msra.mxu0 0
    %737 = vmatprep.subr.bf16.mxu0 0
    %738 = vmatpush1.bf16.xpose.msra.mxu0 0
    %739 = vmatprep.subr.bf16.mxu0 0
    %740 = vmatpush1.bf16.xpose.msra.mxu0 0
    %741 = vmatprep.subr.bf16.mxu0 0
    %742 = vmatpush1.bf16.xpose.msra.mxu0 0
    %743 = vmatprep.subr.bf16.mxu0 0
    %744 = vmatpush1.bf16.xpose.msra.mxu0 0
    %745 = vmatprep.subr.bf16.mxu0 0
    %746 = vmatpush1.bf16.xpose.msra.mxu0 0
    %747 = vmatprep.subr.bf16.mxu0 0
    %748 = vmatpush1.bf16.xpose.msra.mxu0 0
    %749 = vmatprep.subr.bf16.mxu0 0
    %750 = vmatpush1.bf16.xpose.msra.mxu0 0
    %751 = vmatprep.subr.bf16.mxu0 0
    %752 = vmatpush1.bf16.xpose.msra.mxu0 0
    %753 = vmatprep.subr.bf16.mxu0 0
    %754 = vmatpush1.bf16.xpose.msra.mxu0 0
    %755 = vmatprep.subr.bf16.mxu0 0
    %756 = vmatpush1.bf16.xpose.msra.mxu0 0
    %757 = vmatprep.subr.bf16.mxu0 0
    %758 = vmatpush1.bf16.xpose.msra.mxu0 0
    %759 = vmatprep.subr.bf16.mxu0 0
    %760 = vmatpush1.bf16.xpose.msra.mxu0 0
    %761 = vmatprep.subr.bf16.mxu0 0
    %762 = vmatpush1.bf16.xpose.msra.mxu0 0
    %763 = vmatprep.mubr.bf16.mxu0 0
    %764 = vmatmul.mubr.bf16.gmra.mrb[0].mxu0 %v720
    %v765 = vpop.f32.mrb[0].mxu0
    %v766 = vadd.f32 %v354, %v765
    %v767 = vpop.f32.mrb[0].mxu0
    %v768 = vpop.f32.mrb[0].mxu0
    %v769 = vadd.f32 %v355, %v768
    %v770 = vpop.f32.mrb[0].mxu0
    %771 = vmatprep.mubr.bf16.mxu0 0
    %772 = vmatmul.mubr.bf16.gmra.mrb[0].mxu0 %v723
    %v773 = vpop.f32.mrb[0].mxu0
    %v774 = vadd.f32 %v356, %v773
    %v775 = vpop.f32.mrb[0].mxu0
    %v776 = vpop.f32.mrb[0].mxu0
    %v777 = vadd.f32 %v357, %v776
    %v778 = vpop.f32.mrb[0].mxu0
    %779 = vdwg.mxu0
    %v780 = vsel %vm139, %v766, -inf
    %781 = vmax.xlane.f32.xlu0 %v780
    %v782 = vpop.xlane.xlu0 %781
    %v783 = vsel %vm139, %v769, -inf
    %784 = vmax.xlane.f32.xlu0 %v783
    %v785 = vpop.xlane.xlu0 %784
    %v786 = vsel %vm139, %v774, -inf
    %787 = vmax.xlane.f32.xlu0 %v786
    %v788 = vpop.xlane.xlu0 %787
    %v789 = vsel %vm139, %v777, -inf
    %790 = vmax.xlane.f32.xlu0 %v789
    %v791 = vpop.xlane.xlu0 %790
    %v792 = vsub.f32 %v766, %v782
    %v793 = vsub.f32 %v769, %v785
    %v794 = vsub.f32 %v774, %v788
    %v795 = vsub.f32 %v777, %v791
    %v796 = vmul.f32 %v792, 1.442695
    %v797 = vpow.pop %v796
    %v798 = vmul.f32 %v793, 1.442695
    %v799 = vpow.pop %v798
    %v800 = vmul.f32 %v794, 1.442695
    %v801 = vpow.pop %v800
    %v802 = vmul.f32 %v795, 1.442695
    %v803 = vpow.pop %v802
    %v804 = vsel %vm139, %v797, 0.0
    %805 = vadd.xlane.f32.xlu0 %v804
    %v806 = vpop.xlane.xlu0 %805
    %v807 = vsel %vm139, %v799, 0.0
    %808 = vadd.xlane.f32.xlu0 %v807
    %v809 = vpop.xlane.xlu0 %808
    %v810 = vsel %vm139, %v801, 0.0
    %811 = vadd.xlane.f32.xlu0 %v810
    %v812 = vpop.xlane.xlu0 %811
    %v813 = vsel %vm139, %v803, 0.0
    %814 = vadd.xlane.f32.xlu0 %v813
    %v815 = vpop.xlane.xlu0 %814
    %v816 = vrcp.pop %v806
    %v817 = vmul.f32 %v797, %v816
    %v818 = vrcp.pop %v809
    %v819 = vmul.f32 %v799, %v818
    %v820 = vrcp.pop %v812
    %v821 = vmul.f32 %v801, %v820
    %v822 = vrcp.pop %v815
    %v823 = vmul.f32 %v803, %v822
    %v824 = vpack.c.bf16 %v819, %v817
    %v825 = vpack.c.bf16 %v823, %v821
    %826 = vrot.lane.b32.xlu0 %v352, 48
    %v827 = vpop.permute.xlu0 %826
    %828 = vrot.lane.b32.xlu0 %v353, 48
    %v829 = vpop.permute.xlu0 %828
    %v833 = vsel %vm139, %v824, 0
    %v836 = vsel %vm139, %v825, 0
    %838 = vmatprep.subr.bf16.mxu0 0
    %839 = vmatpush1.bf16.msra.mxu0 %v827
    %840 = vmatprep.subr.bf16.mxu0 0
    %841 = vmatpush1.bf16.msra.mxu0 %v829
    %842 = vmatprep.subr.bf16.mxu0 0
    %843 = vmatpush1.bf16.msra.mxu0 0
    %844 = vmatprep.subr.bf16.mxu0 0
    %845 = vmatpush1.bf16.msra.mxu0 0
    %846 = vmatprep.subr.bf16.mxu0 0
    %847 = vmatpush1.bf16.msra.mxu0 0
    %848 = vmatprep.subr.bf16.mxu0 0
    %849 = vmatpush1.bf16.msra.mxu0 0
    %850 = vmatprep.subr.bf16.mxu0 0
    %851 = vmatpush1.bf16.msra.mxu0 0
    %852 = vmatprep.subr.bf16.mxu0 0
    %853 = vmatpush1.bf16.msra.mxu0 0
    %854 = vmatprep.subr.bf16.mxu0 0
    %855 = vmatpush1.bf16.msra.mxu0 0
    %856 = vmatprep.subr.bf16.mxu0 0
    %857 = vmatpush1.bf16.msra.mxu0 0
    %858 = vmatprep.subr.bf16.mxu0 0
    %859 = vmatpush1.bf16.msra.mxu0 0
    %860 = vmatprep.subr.bf16.mxu0 0
    %861 = vmatpush1.bf16.msra.mxu0 0
    %862 = vmatprep.subr.bf16.mxu0 0
    %863 = vmatpush1.bf16.msra.mxu0 0
    %864 = vmatprep.subr.bf16.mxu0 0
    %865 = vmatpush1.bf16.msra.mxu0 0
    %866 = vmatprep.subr.bf16.mxu0 0
    %867 = vmatpush1.bf16.msra.mxu0 0
    %868 = vmatprep.subr.bf16.mxu0 0
    %869 = vmatpush1.bf16.msra.mxu0 0
    %870 = vmatprep.mubr.bf16.mxu0 0
    %871 = vmatmul.mubr.bf16.gmra.mrb[0].mxu0 %v833
    %v872 = vpop.f32.mrb[0].mxu0
    %v873 = vadd.f32 0.0, %v872
    %v874 = vpop.f32.mrb[0].mxu0
    %v875 = vpop.f32.mrb[0].mxu0
    %v876 = vadd.f32 0.0, %v875
    %v877 = vpop.f32.mrb[0].mxu0
    %878 = vmatprep.mubr.bf16.mxu0 0
    %879 = vmatmul.mubr.bf16.gmra.mrb[0].mxu0 %v836
    %v880 = vpop.f32.mrb[0].mxu0
    %v881 = vadd.f32 0.0, %v880
    %v882 = vpop.f32.mrb[0].mxu0
    %v883 = vpop.f32.mrb[0].mxu0
    %v884 = vadd.f32 0.0, %v883
    %v885 = vpop.f32.mrb[0].mxu0
    %886 = vdwg.mxu0
    %887 = vrot.lane.b32.xlu0 %v350, 104
    %v888 = vpop.permute.xlu0 %887
    %889 = vrot.lane.b32.xlu0 %v351, 104
    %v890 = vpop.permute.xlu0 %889
    %891 = vrot.lane.b32.xlu0 %v352, 72
    %v892 = vpop.permute.xlu0 %891
    %893 = vrot.lane.b32.xlu0 %v353, 72
    %v894 = vpop.permute.xlu0 %893
    %v896 = vsel %vm364, %v888, 0
    %v899 = vsel %vm364, %v890, 0
    %v902 = vsel %vm364, %v892, 0
    %v905 = vsel %vm364, %v894, 0
    %907 = vmatprep.subr.bf16.mxu0 0
    %908 = vmatpush1.bf16.xpose.msra.mxu0 %v902
    %909 = vmatprep.subr.bf16.mxu0 0
    %910 = vmatpush1.bf16.xpose.msra.mxu0 %v905
    %911 = vmatprep.subr.bf16.mxu0 0
    %912 = vmatpush1.bf16.xpose.msra.mxu0 0
    %913 = vmatprep.subr.bf16.mxu0 0
    %914 = vmatpush1.bf16.xpose.msra.mxu0 0
    %915 = vmatprep.subr.bf16.mxu0 0
    %916 = vmatpush1.bf16.xpose.msra.mxu0 0
    %917 = vmatprep.subr.bf16.mxu0 0
    %918 = vmatpush1.bf16.xpose.msra.mxu0 0
    %919 = vmatprep.subr.bf16.mxu0 0
    %920 = vmatpush1.bf16.xpose.msra.mxu0 0
    %921 = vmatprep.subr.bf16.mxu0 0
    %922 = vmatpush1.bf16.xpose.msra.mxu0 0
    %923 = vmatprep.subr.bf16.mxu0 0
    %924 = vmatpush1.bf16.xpose.msra.mxu0 0
    %925 = vmatprep.subr.bf16.mxu0 0
    %926 = vmatpush1.bf16.xpose.msra.mxu0 0
    %927 = vmatprep.subr.bf16.mxu0 0
    %928 = vmatpush1.bf16.xpose.msra.mxu0 0
    %929 = vmatprep.subr.bf16.mxu0 0
    %930 = vmatpush1.bf16.xpose.msra.mxu0 0
    %931 = vmatprep.subr.bf16.mxu0 0
    %932 = vmatpush1.bf16.xpose.msra.mxu0 0
    %933 = vmatprep.subr.bf16.mxu0 0
    %934 = vmatpush1.bf16.xpose.msra.mxu0 0
    %935 = vmatprep.subr.bf16.mxu0 0
    %936 = vmatpush1.bf16.xpose.msra.mxu0 0
    %937 = vmatprep.subr.bf16.mxu0 0
    %938 = vmatpush1.bf16.xpose.msra.mxu0 0
    %939 = vmatprep.mubr.bf16.mxu0 0
    %940 = vmatmul.mubr.bf16.gmra.mrb[0].mxu0 %v896
    %v941 = vpop.f32.mrb[0].mxu0
    %v942 = vadd.f32 %v354, %v941
    %v943 = vpop.f32.mrb[0].mxu0
    %v944 = vpop.f32.mrb[0].mxu0
    %v945 = vadd.f32 %v355, %v944
    %v946 = vpop.f32.mrb[0].mxu0
    %947 = vmatprep.mubr.bf16.mxu0 0
    %948 = vmatmul.mubr.bf16.gmra.mrb[0].mxu0 %v899
    %v949 = vpop.f32.mrb[0].mxu0
    %v950 = vadd.f32 %v356, %v949
    %v951 = vpop.f32.mrb[0].mxu0
    %v952 = vpop.f32.mrb[0].mxu0
    %v953 = vadd.f32 %v357, %v952
    %v954 = vpop.f32.mrb[0].mxu0
    %955 = vdwg.mxu0
    %v956 = vsel %vm139, %v942, -inf
    %957 = vmax.xlane.f32.xlu0 %v956
    %v958 = vpop.xlane.xlu0 %957
    %v959 = vsel %vm139, %v945, -inf
    %960 = vmax.xlane.f32.xlu0 %v959
    %v961 = vpop.xlane.xlu0 %960
    %v962 = vsel %vm139, %v950, -inf
    %963 = vmax.xlane.f32.xlu0 %v962
    %v964 = vpop.xlane.xlu0 %963
    %v965 = vsel %vm139, %v953, -inf
    %966 = vmax.xlane.f32.xlu0 %v965
    %v967 = vpop.xlane.xlu0 %966
    %v968 = vsub.f32 %v942, %v958
    %v969 = vsub.f32 %v945, %v961
    %v970 = vsub.f32 %v950, %v964
    %v971 = vsub.f32 %v953, %v967
    %v972 = vmul.f32 %v968, 1.442695
    %v973 = vpow.pop %v972
    %v974 = vmul.f32 %v969, 1.442695
    %v975 = vpow.pop %v974
    %v976 = vmul.f32 %v970, 1.442695
    %v977 = vpow.pop %v976
    %v978 = vmul.f32 %v971, 1.442695
    %v979 = vpow.pop %v978
    %v980 = vsel %vm139, %v973, 0.0
    %981 = vadd.xlane.f32.xlu0 %v980
    %v982 = vpop.xlane.xlu0 %981
    %v983 = vsel %vm139, %v975, 0.0
    %984 = vadd.xlane.f32.xlu0 %v983
    %v985 = vpop.xlane.xlu0 %984
    %v986 = vsel %vm139, %v977, 0.0
    %987 = vadd.xlane.f32.xlu0 %v986
    %v988 = vpop.xlane.xlu0 %987
    %v989 = vsel %vm139, %v979, 0.0
    %990 = vadd.xlane.f32.xlu0 %v989
    %v991 = vpop.xlane.xlu0 %990
    %v992 = vrcp.pop %v982
    %v993 = vmul.f32 %v973, %v992
    %v994 = vrcp.pop %v985
    %v995 = vmul.f32 %v975, %v994
    %v996 = vrcp.pop %v988
    %v997 = vmul.f32 %v977, %v996
    %v998 = vrcp.pop %v991
    %v999 = vmul.f32 %v979, %v998
    %v1000 = vpack.c.bf16 %v995, %v993
    %v1001 = vpack.c.bf16 %v999, %v997
    %1002 = vrot.lane.b32.xlu0 %v352, 40
    %v1003 = vpop.permute.xlu0 %1002
    %1004 = vrot.lane.b32.xlu0 %v353, 40
    %v1005 = vpop.permute.xlu0 %1004
    %v1009 = vsel %vm139, %v1000, 0
    %v1012 = vsel %vm139, %v1001, 0
    %1014 = vmatprep.subr.bf16.mxu0 0
    %1015 = vmatpush1.bf16.msra.mxu0 %v1003
    %1016 = vmatprep.subr.bf16.mxu0 0
    %1017 = vmatpush1.bf16.msra.mxu0 %v1005
    %1018 = vmatprep.subr.bf16.mxu0 0
    %1019 = vmatpush1.bf16.msra.mxu0 0
    %1020 = vmatprep.subr.bf16.mxu0 0
    %1021 = vmatpush1.bf16.msra.mxu0 0
    %1022 = vmatprep.subr.bf16.mxu0 0
    %1023 = vmatpush1.bf16.msra.mxu0 0
    %1024 = vmatprep.subr.bf16.mxu0 0
    %1025 = vmatpush1.bf16.msra.mxu0 0
    %1026 = vmatprep.subr.bf16.mxu0 0
    %1027 = vmatpush1.bf16.msra.mxu0 0
    %1028 = vmatprep.subr.bf16.mxu0 0
    %1029 = vmatpush1.bf16.msra.mxu0 0
    %1030 = vmatprep.subr.bf16.mxu0 0
    %1031 = vmatpush1.bf16.msra.mxu0 0
    %1032 = vmatprep.subr.bf16.mxu0 0
    %1033 = vmatpush1.bf16.msra.mxu0 0
    %1034 = vmatprep.subr.bf16.mxu0 0
    %1035 = vmatpush1.bf16.msra.mxu0 0
    %1036 = vmatprep.subr.bf16.mxu0 0
    %1037 = vmatpush1.bf16.msra.mxu0 0
    %1038 = vmatprep.subr.bf16.mxu0 0
    %1039 = vmatpush1.bf16.msra.mxu0 0
    %1040 = vmatprep.subr.bf16.mxu0 0
    %1041 = vmatpush1.bf16.msra.mxu0 0
    %1042 = vmatprep.subr.bf16.mxu0 0
    %1043 = vmatpush1.bf16.msra.mxu0 0
    %1044 = vmatprep.subr.bf16.mxu0 0
    %1045 = vmatpush1.bf16.msra.mxu0 0
    %1046 = vmatprep.mubr.bf16.mxu0 0
    %1047 = vmatmul.mubr.bf16.gmra.mrb[0].mxu0 %v1009
    %v1048 = vpop.f32.mrb[0].mxu0
    %v1049 = vadd.f32 0.0, %v1048
    %v1050 = vpop.f32.mrb[0].mxu0
    %v1051 = vpop.f32.mrb[0].mxu0
    %v1052 = vadd.f32 0.0, %v1051
    %v1053 = vpop.f32.mrb[0].mxu0
    %1054 = vmatprep.mubr.bf16.mxu0 0
    %1055 = vmatmul.mubr.bf16.gmra.mrb[0].mxu0 %v1012
    %v1056 = vpop.f32.mrb[0].mxu0
    %v1057 = vadd.f32 0.0, %v1056
    %v1058 = vpop.f32.mrb[0].mxu0
    %v1059 = vpop.f32.mrb[0].mxu0
    %v1060 = vadd.f32 0.0, %v1059
    %v1061 = vpop.f32.mrb[0].mxu0
    %1062 = vdwg.mxu0
    %1067 = vrot.lane.b32.xlu0 %v697, 8
    %v1068 = vpop.permute.xlu0 %1067
    %1069 = vrot.lane.b32.xlu0 %v700, 8
    %v1070 = vpop.permute.xlu0 %1069
    %1071 = vrot.lane.b32.xlu0 %v705, 8
    %v1072 = vpop.permute.xlu0 %1071
    %1073 = vrot.lane.b32.xlu0 %v708, 8
    %v1074 = vpop.permute.xlu0 %1073
    %1083 = vrot.lane.b32.xlu0 %v873, 16
    %v1084 = vpop.permute.xlu0 %1083
    %1085 = vrot.lane.b32.xlu0 %v876, 16
    %v1086 = vpop.permute.xlu0 %1085
    %1087 = vrot.lane.b32.xlu0 %v881, 16
    %v1088 = vpop.permute.xlu0 %1087
    %1089 = vrot.lane.b32.xlu0 %v884, 16
    %v1090 = vpop.permute.xlu0 %1089
    %1099 = vrot.lane.b32.xlu0 %v1049, 24
    %v1100 = vpop.permute.xlu0 %1099
    %1101 = vrot.lane.b32.xlu0 %v1052, 24
    %v1102 = vpop.permute.xlu0 %1101
    %1103 = vrot.lane.b32.xlu0 %v1057, 24
    %v1104 = vpop.permute.xlu0 %1103
    %1105 = vrot.lane.b32.xlu0 %v1060, 24
    %v1106 = vpop.permute.xlu0 %1105
    %v1111 = vsel %vm364, %v519, %v1068
    %v1112 = vsel %vm364, %v522, %v1070
    %v1113 = vsel %vm364, %v527, %v1072
    %v1114 = vsel %vm364, %v530, %v1074
    %v1115 = vsel %vm241, %v1111, %v1084
    %v1116 = vsel %vm241, %v1112, %v1086
    %v1117 = vsel %vm241, %v1113, %v1088
    %v1118 = vsel %vm241, %v1114, %v1090
    %vm1119 = vcmask 195584
    %v1120 = vsel %vm1119, %v1115, %v1100
    %v1121 = vsel %vm1119, %v1116, %v1102
    %v1122 = vsel %vm1119, %v1117, %v1104
    %v1123 = vsel %vm1119, %v1118, %v1106
    %v1124 = vpack.c.bf16 %v1121, %v1120
    %v1125 = vpack.c.bf16 %v1123, %v1122
    %v1126 = vld [vmem:[#allocation8] sm:$0xf]
    %v1127 = vld [vmem:[#allocation8 + $0x4] sm:$0xf]
    %v1128 = vld [vmem:[#allocation8 + $0x8] sm:$0xf]
    %v1129 = vld [vmem:[#allocation8 + $0xc] sm:$0xf]
    %v1130 = vld [vmem:[#allocation10] sm:$0x1]
    %v1132 = vlaneseq
    %v1133 = vshrl.u32 %v1132, 7
    %v1134 = vsub.s32 0, %v1133
    %v1135 = vrot.slane %v1130, %v1134
    %v1141 = vunpack.c.l.b16 %v1126
    %v1142 = vunpack.c.l.b16 %v1127
    %v1143 = vunpack.c.l.b16 %v1128
    %v1144 = vunpack.c.l.b16 %v1129
    %v1145 = vpack.c.b16 %v1142, %v1141
    %v1146 = vpack.c.b16 %v1144, %v1143
    %v1150 = vsel %vm139, %v1124, 0
    %v1153 = vsel %vm139, %v1125, 0
    %1155 = vmatprep.subr.bf16.mxu0 0
    %1156 = vmatpush1.bf16.msra.mxu0 %v1145
    %1157 = vmatprep.subr.bf16.mxu0 0
    %1158 = vmatpush1.bf16.msra.mxu0 %v1146
    %1159 = vmatprep.subr.bf16.mxu0 0
    %1160 = vmatpush1.bf16.msra.mxu0 0
    %1161 = vmatprep.subr.bf16.mxu0 0
    %1162 = vmatpush1.bf16.msra.mxu0 0
    %1163 = vmatprep.subr.bf16.mxu0 0
    %1164 = vmatpush1.bf16.msra.mxu0 0
    %1165 = vmatprep.subr.bf16.mxu0 0
    %1166 = vmatpush1.bf16.msra.mxu0 0
    %1167 = vmatprep.subr.bf16.mxu0 0
    %1168 = vmatpush1.bf16.msra.mxu0 0
    %1169 = vmatprep.subr.bf16.mxu0 0
    %1170 = vmatpush1.bf16.msra.mxu0 0
    %1171 = vmatprep.subr.bf16.mxu0 0
    %1172 = vmatpush1.bf16.msra.mxu0 0
    %1173 = vmatprep.subr.bf16.mxu0 0
    %1174 = vmatpush1.bf16.msra.mxu0 0
    %1175 = vmatprep.subr.bf16.mxu0 0
    %1176 = vmatpush1.bf16.msra.mxu0 0
    %1177 = vmatprep.subr.bf16.mxu0 0
    %1178 = vmatpush1.bf16.msra.mxu0 0
    %1179 = vmatprep.subr.bf16.mxu0 0
    %1180 = vmatpush1.bf16.msra.mxu0 0
    %1181 = vmatprep.subr.bf16.mxu0 0
    %1182 = vmatpush1.bf16.msra.mxu0 0
    %1183 = vmatprep.subr.bf16.mxu0 0
    %1184 = vmatpush1.bf16.msra.mxu0 0
    %1185 = vmatprep.subr.bf16.mxu0 0
    %1186 = vmatpush1.bf16.msra.mxu0 0
    %1187 = vmatprep.mubr.bf16.mxu0 0
    %1188 = vmatmul.mubr.bf16.gmra.mrb[0].mxu0 %v1150
    %v1189 = vpop.f32.mrb[0].mxu0
    %v1190 = vadd.f32 %v1135, %v1189
    %v1191 = vpop.f32.mrb[0].mxu0
    %v1192 = vpop.f32.mrb[0].mxu0
    %v1193 = vadd.f32 %v1135, %v1192
    %v1194 = vpop.f32.mrb[0].mxu0
    %1195 = vmatprep.mubr.bf16.mxu0 0
    %1196 = vmatmul.mubr.bf16.gmra.mrb[0].mxu0 %v1153
    %v1197 = vpop.f32.mrb[0].mxu0
    %v1198 = vadd.f32 %v1135, %v1197
    %v1199 = vpop.f32.mrb[0].mxu0
    %v1200 = vpop.f32.mrb[0].mxu0
    %v1201 = vadd.f32 %v1135, %v1200
    %v1202 = vpop.f32.mrb[0].mxu0
    %1203 = vdwg.mxu0
    %v1204 = vadd.f32 %v133, %v1190
    %v1205 = vadd.f32 %v134, %v1193
    %v1206 = vadd.f32 %v135, %v1198
    %v1207 = vadd.f32 %v136, %v1201
    %v1208 = vsel %vm139, %v1204, 0.0
    %1209 = vadd.xlane.f32.xlu0 %v1208
    %v1210 = vpop.xlane.xlu0 %1209
    %v1211 = vsel %vm139, %v1205, 0.0
    %1212 = vadd.xlane.f32.xlu0 %v1211
    %v1213 = vpop.xlane.xlu0 %1212
    %v1214 = vsel %vm139, %v1206, 0.0
    %1215 = vadd.xlane.f32.xlu0 %v1214
    %v1216 = vpop.xlane.xlu0 %1215
    %v1217 = vsel %vm139, %v1207, 0.0
    %1218 = vadd.xlane.f32.xlu0 %v1217
    %v1219 = vpop.xlane.xlu0 %1218
    %v1220 = vmul.f32 %v1210, %v152
    %v1221 = vmul.f32 %v1213, %v152
    %v1222 = vmul.f32 %v1216, %v152
    %v1223 = vmul.f32 %v1219, %v152
    %v1224 = vsub.f32 %v1204, %v1220
    %v1225 = vsub.f32 %v1205, %v1221
    %v1226 = vsub.f32 %v1206, %v1222
    %v1227 = vsub.f32 %v1207, %v1223
    %v1228 = vmul.f32 %v1224, %v1224
    %v1229 = vmul.f32 %v1225, %v1225
    %v1230 = vmul.f32 %v1226, %v1226
    %v1231 = vmul.f32 %v1227, %v1227
    %v1232 = vsel %vm139, %v1228, 0.0
    %1233 = vadd.xlane.f32.xlu0 %v1232
    %v1234 = vpop.xlane.xlu0 %1233
    %v1235 = vsel %vm139, %v1229, 0.0
    %1236 = vadd.xlane.f32.xlu0 %v1235
    %v1237 = vpop.xlane.xlu0 %1236
    %v1238 = vsel %vm139, %v1230, 0.0
    %1239 = vadd.xlane.f32.xlu0 %v1238
    %v1240 = vpop.xlane.xlu0 %1239
    %v1241 = vsel %vm139, %v1231, 0.0
    %1242 = vadd.xlane.f32.xlu0 %v1241
    %v1243 = vpop.xlane.xlu0 %1242
    %v1244 = vmul.f32 %v1234, %v152
    %v1245 = vmul.f32 %v1237, %v152
    %v1246 = vmul.f32 %v1240, %v152
    %v1247 = vmul.f32 %v1243, %v152
    %v1248 = vadd.f32 %v1244, 1e-05
    %v1249 = vadd.f32 %v1245, 1e-05
    %v1250 = vadd.f32 %v1246, 1e-05
    %v1251 = vadd.f32 %v1247, 1e-05
    %v1252 = vrsqrt.pop %v1248
    %v1253 = vrsqrt.pop %v1249
    %v1254 = vrsqrt.pop %v1250
    %v1255 = vrsqrt.pop %v1251
    %v1256 = vmul.f32 %v1224, %v1252
    %v1257 = vmul.f32 %v1225, %v1253
    %v1258 = vmul.f32 %v1226, %v1254
    %v1259 = vmul.f32 %v1227, %v1255
    %v1260 = vmul.f32 %v1256, %v197
    %v1261 = vmul.f32 %v1257, %v197
    %v1262 = vmul.f32 %v1258, %v197
    %v1263 = vmul.f32 %v1259, %v197
    %v1264 = vadd.f32 %v1260, %v207
    %v1265 = vadd.f32 %v1261, %v207
    %v1266 = vadd.f32 %v1262, %v207
    %v1267 = vadd.f32 %v1263, %v207
    %v1268 = vld [vmem:[%s10] sm:$0x1]
    %v1269 = vld [vmem:[%s11] sm:$0x1]
    %v1270 = vsel %vm139, %v1264, 0.0
    %1271 = vadd.xlane.f32.xlu0 %v1270
    %v1272 = vpop.xlane.xlu0 %1271
    %v1273 = vsel %vm139, %v1265, 0.0
    %1274 = vadd.xlane.f32.xlu0 %v1273
    %v1275 = vpop.xlane.xlu0 %1274
    %v1276 = vsel %vm139, %v1266, 0.0
    %1277 = vadd.xlane.f32.xlu0 %v1276
    %v1278 = vpop.xlane.xlu0 %1277
    %v1279 = vsel %vm139, %v1267, 0.0
    %1280 = vadd.xlane.f32.xlu0 %v1279
    %v1281 = vpop.xlane.xlu0 %1280
    %v1282 = vmul.f32 %v1272, %v152
    %v1283 = vmul.f32 %v1275, %v152
    %v1284 = vmul.f32 %v1278, %v152
    %v1285 = vmul.f32 %v1281, %v152
    %v1286 = vsub.f32 %v1264, %v1282
    %v1287 = vsub.f32 %v1265, %v1283
    %v1288 = vsub.f32 %v1266, %v1284
    %v1289 = vsub.f32 %v1267, %v1285
    %v1290 = vmul.f32 %v1286, %v1286
    %v1291 = vmul.f32 %v1287, %v1287
    %v1292 = vmul.f32 %v1288, %v1288
    %v1293 = vmul.f32 %v1289, %v1289
    %v1294 = vsel %vm139, %v1290, 0.0
    %1295 = vadd.xlane.f32.xlu0 %v1294
    %v1296 = vpop.xlane.xlu0 %1295
    %v1297 = vsel %vm139, %v1291, 0.0
    %1298 = vadd.xlane.f32.xlu0 %v1297
    %v1299 = vpop.xlane.xlu0 %1298
    %v1300 = vsel %vm139, %v1292, 0.0
    %1301 = vadd.xlane.f32.xlu0 %v1300
    %v1302 = vpop.xlane.xlu0 %1301
    %v1303 = vsel %vm139, %v1293, 0.0
    %1304 = vadd.xlane.f32.xlu0 %v1303
    %v1305 = vpop.xlane.xlu0 %1304
    %v1306 = vmul.f32 %v1296, %v152
    %v1307 = vmul.f32 %v1299, %v152
    %v1308 = vmul.f32 %v1302, %v152
    %v1309 = vmul.f32 %v1305, %v152
    %v1310 = vadd.f32 %v1306, 1e-05
    %v1311 = vadd.f32 %v1307, 1e-05
    %v1312 = vadd.f32 %v1308, 1e-05
    %v1313 = vadd.f32 %v1309, 1e-05
    %v1314 = vrsqrt.pop %v1310
    %v1315 = vrsqrt.pop %v1311
    %v1316 = vrsqrt.pop %v1312
    %v1317 = vrsqrt.pop %v1313
    %v1318 = vmul.f32 %v1286, %v1314
    %v1319 = vmul.f32 %v1287, %v1315
    %v1320 = vmul.f32 %v1288, %v1316
    %v1321 = vmul.f32 %v1289, %v1317
    %v1323 = vlaneseq
    %v1324 = vshrl.u32 %v1323, 7
    %v1325 = vsub.s32 0, %v1324
    %v1326 = vrot.slane %v1268, %v1325
    %v1328 = vmul.f32 %v1318, %v1326
    %v1329 = vmul.f32 %v1319, %v1326
    %v1330 = vmul.f32 %v1320, %v1326
    %v1331 = vmul.f32 %v1321, %v1326
    %v1333 = vlaneseq
    %v1334 = vshrl.u32 %v1333, 7
    %v1335 = vsub.s32 0, %v1334
    %v1336 = vrot.slane %v1269, %v1335
    %v1338 = vadd.f32 %v1328, %v1336
    %v1339 = vadd.f32 %v1329, %v1336
    %v1340 = vadd.f32 %v1330, %v1336
    %v1341 = vadd.f32 %v1331, %v1336
    %v1342 = vpack.c.bf16 %v1339, %v1338
    %v1343 = vpack.c.bf16 %v1341, %v1340
    %v1344 = vld [vmem:[#allocation11] sm:$0xf]
    %v1345 = vld [vmem:[#allocation11 + $0x4] sm:$0xf]
    %v1346 = vld [vmem:[#allocation11 + $0x8] sm:$0xf]
    %v1347 = vld [vmem:[#allocation11 + $0xc] sm:$0xf]
    %v1348 = vld [vmem:[%s13] sm:$0x1]
    %v1350 = vlaneseq
    %v1351 = vshrl.u32 %v1350, 7
    %v1352 = vsub.s32 0, %v1351
    %v1353 = vrot.slane %v1348, %v1352
    %v1359 = vunpack.c.l.b16 %v1344
    %v1360 = vunpack.c.l.b16 %v1345
    %v1361 = vunpack.c.l.b16 %v1346
    %v1362 = vunpack.c.l.b16 %v1347
    %v1363 = vpack.c.b16 %v1360, %v1359
    %v1364 = vpack.c.b16 %v1362, %v1361
    %v1368 = vsel %vm139, %v1342, 0
    %v1371 = vsel %vm139, %v1343, 0
    %1373 = vmatprep.subr.bf16.mxu0 0
    %1374 = vmatpush1.bf16.msra.mxu0 %v1363
    %1375 = vmatprep.subr.bf16.mxu0 0
    %1376 = vmatpush1.bf16.msra.mxu0 %v1364
    %1377 = vmatprep.subr.bf16.mxu0 0
    %1378 = vmatpush1.bf16.msra.mxu0 0
    %1379 = vmatprep.subr.bf16.mxu0 0
    %1380 = vmatpush1.bf16.msra.mxu0 0
    %1381 = vmatprep.subr.bf16.mxu0 0
    %1382 = vmatpush1.bf16.msra.mxu0 0
    %1383 = vmatprep.subr.bf16.mxu0 0
    %1384 = vmatpush1.bf16.msra.mxu0 0
    %1385 = vmatprep.subr.bf16.mxu0 0
    %1386 = vmatpush1.bf16.msra.mxu0 0
    %1387 = vmatprep.subr.bf16.mxu0 0
    %1388 = vmatpush1.bf16.msra.mxu0 0
    %1389 = vmatprep.subr.bf16.mxu0 0
    %1390 = vmatpush1.bf16.msra.mxu0 0
    %1391 = vmatprep.subr.bf16.mxu0 0
    %1392 = vmatpush1.bf16.msra.mxu0 0
    %1393 = vmatprep.subr.bf16.mxu0 0
    %1394 = vmatpush1.bf16.msra.mxu0 0
    %1395 = vmatprep.subr.bf16.mxu0 0
    %1396 = vmatpush1.bf16.msra.mxu0 0
    %1397 = vmatprep.subr.bf16.mxu0 0
    %1398 = vmatpush1.bf16.msra.mxu0 0
    %1399 = vmatprep.subr.bf16.mxu0 0
    %1400 = vmatpush1.bf16.msra.mxu0 0
    %1401 = vmatprep.subr.bf16.mxu0 0
    %1402 = vmatpush1.bf16.msra.mxu0 0
    %1403 = vmatprep.subr.bf16.mxu0 0
    %1404 = vmatpush1.bf16.msra.mxu0 0
    %1405 = vmatprep.mubr.bf16.mxu0 0
    %1406 = vmatmul.mubr.bf16.gmra.mrb[0].mxu0 %v1368
    %v1407 = vpop.f32.mrb[0].mxu0
    %v1408 = vadd.f32 %v1353, %v1407
    %v1409 = vpop.f32.mrb[0].mxu0
    %v1410 = vpop.f32.mrb[0].mxu0
    %v1411 = vadd.f32 %v1353, %v1410
    %v1412 = vpop.f32.mrb[0].mxu0
    %1413 = vmatprep.mubr.bf16.mxu0 0
    %1414 = vmatmul.mubr.bf16.gmra.mrb[0].mxu0 %v1371
    %v1415 = vpop.f32.mrb[0].mxu0
    %v1416 = vadd.f32 %v1353, %v1415
    %v1417 = vpop.f32.mrb[0].mxu0
    %v1418 = vpop.f32.mrb[0].mxu0
    %v1419 = vadd.f32 %v1353, %v1418
    %v1420 = vpop.f32.mrb[0].mxu0
    %1421 = vdwg.mxu0
    %v1422 = vmul.f32 %v1408, 0.5
    %v1423 = vmul.f32 %v1411, 0.5
    %v1424 = vmul.f32 %v1416, 0.5
    %v1425 = vmul.f32 %v1419, 0.5
    %v1426 = vmul.f32 %v1408, 0.70710677
    %v1427 = vmul.f32 %v1411, 0.70710677
    %v1428 = vmul.f32 %v1416, 0.70710677
    %v1429 = vmul.f32 %v1419, 0.70710677
    %vm1430 = vcmp.ge.f32.partialorder %v1426, 0.0
    %vm1431 = vcmp.ge.f32.partialorder %v1427, 0.0
    %vm1432 = vcmp.ge.f32.partialorder %v1428, 0.0
    %vm1433 = vcmp.ge.f32.partialorder %v1429, 0.0
    %v1434 = vsel %vm1430, 1.0, -1.0
    %v1435 = vsel %vm1431, 1.0, -1.0
    %v1436 = vsel %vm1432, 1.0, -1.0
    %v1437 = vsel %vm1433, 1.0, -1.0
    %v1438 = vand.u32 2147483647, %v1426
    %v1439 = vand.u32 2147483647, %v1427
    %v1440 = vand.u32 2147483647, %v1428
    %v1441 = vand.u32 2147483647, %v1429
    %v1442 = vmul.f32 %v1438, 0.3275911
    %v1443 = vmul.f32 %v1439, 0.3275911
    %v1444 = vmul.f32 %v1440, 0.3275911
    %v1445 = vmul.f32 %v1441, 0.3275911
    %v1446 = vadd.f32 %v1442, 1.0
    %v1447 = vadd.f32 %v1443, 1.0
    %v1448 = vadd.f32 %v1444, 1.0
    %v1449 = vadd.f32 %v1445, 1.0
    %v1450 = vrcp.pop %v1446
    %v1451 = vmul.f32 1.0, %v1450
    %v1452 = vrcp.pop %v1447
    %v1453 = vmul.f32 1.0, %v1452
    %v1454 = vrcp.pop %v1448
    %v1455 = vmul.f32 1.0, %v1454
    %v1456 = vrcp.pop %v1449
    %v1457 = vmul.f32 1.0, %v1456
    %v1458 = vmul.f32 %v1451, 1.0614054
    %v1459 = vmul.f32 %v1453, 1.0614054
    %v1460 = vmul.f32 %v1455, 1.0614054
    %v1461 = vmul.f32 %v1457, 1.0614054
    %v1462 = vadd.f32 %v1458, -1.4531521
    %v1463 = vadd.f32 %v1459, -1.4531521
    %v1464 = vadd.f32 %v1460, -1.4531521
    %v1465 = vadd.f32 %v1461, -1.4531521
    %v1466 = vmul.f32 %v1462, %v1451
    %v1467 = vmul.f32 %v1463, %v1453
    %v1468 = vmul.f32 %v1464, %v1455
    %v1469 = vmul.f32 %v1465, %v1457
    %v1470 = vadd.f32 %v1466, 1.4214138
    %v1471 = vadd.f32 %v1467, 1.4214138
    %v1472 = vadd.f32 %v1468, 1.4214138
    %v1473 = vadd.f32 %v1469, 1.4214138
    %v1474 = vmul.f32 %v1470, %v1451
    %v1475 = vmul.f32 %v1471, %v1453
    %v1476 = vmul.f32 %v1472, %v1455
    %v1477 = vmul.f32 %v1473, %v1457
    %v1478 = vadd.f32 %v1474, -0.28449672
    %v1479 = vadd.f32 %v1475, -0.28449672
    %v1480 = vadd.f32 %v1476, -0.28449672
    %v1481 = vadd.f32 %v1477, -0.28449672
    %v1482 = vmul.f32 %v1478, %v1451
    %v1483 = vmul.f32 %v1479, %v1453
    %v1484 = vmul.f32 %v1480, %v1455
    %v1485 = vmul.f32 %v1481, %v1457
    %v1486 = vadd.f32 %v1482, 0.2548296
    %v1487 = vadd.f32 %v1483, 0.2548296
    %v1488 = vadd.f32 %v1484, 0.2548296
    %v1489 = vadd.f32 %v1485, 0.2548296
    %v1490 = vmul.f32 %v1486, %v1451
    %v1491 = vmul.f32 %v1487, %v1453
    %v1492 = vmul.f32 %v1488, %v1455
    %v1493 = vmul.f32 %v1489, %v1457
    %v1494 = vsub.f32 0.0, %v1438
    %v1495 = vsub.f32 0.0, %v1439
    %v1496 = vsub.f32 0.0, %v1440
    %v1497 = vsub.f32 0.0, %v1441
    %v1498 = vmul.f32 %v1494, %v1438
    %v1499 = vmul.f32 %v1495, %v1439
    %v1500 = vmul.f32 %v1496, %v1440
    %v1501 = vmul.f32 %v1497, %v1441
    %v1502 = vmul.f32 %v1498, 1.442695
    %v1503 = vpow.pop %v1502
    %v1504 = vmul.f32 %v1499, 1.442695
    %v1505 = vpow.pop %v1504
    %v1506 = vmul.f32 %v1500, 1.442695
    %v1507 = vpow.pop %v1506
    %v1508 = vmul.f32 %v1501, 1.442695
    %v1509 = vpow.pop %v1508
    %v1510 = vmul.f32 %v1490, %v1503
    %v1511 = vmul.f32 %v1491, %v1505
    %v1512 = vmul.f32 %v1492, %v1507
    %v1513 = vmul.f32 %v1493, %v1509
    %v1514 = vsub.f32 1.0, %v1510
    %v1515 = vsub.f32 1.0, %v1511
    %v1516 = vsub.f32 1.0, %v1512
    %v1517 = vsub.f32 1.0, %v1513
    %v1518 = vmul.f32 %v1434, %v1514
    %v1519 = vmul.f32 %v1435, %v1515
    %v1520 = vmul.f32 %v1436, %v1516
    %v1521 = vmul.f32 %v1437, %v1517
    %v1522 = vadd.f32 %v1518, 1.0
    %v1523 = vadd.f32 %v1519, 1.0
    %v1524 = vadd.f32 %v1520, 1.0
    %v1525 = vadd.f32 %v1521, 1.0
    %v1526 = vmul.f32 %v1422, %v1522
    %v1527 = vmul.f32 %v1423, %v1523
    %v1528 = vmul.f32 %v1424, %v1524
    %v1529 = vmul.f32 %v1425, %v1525
    %v1530 = vpack.c.bf16 %v1527, %v1526
    %v1531 = vpack.c.bf16 %v1529, %v1528
    %v1532 = vld [vmem:[%s14] sm:$0xf]
    %v1533 = vld [vmem:[%s14 + $0x4] sm:$0xf]
    %v1534 = vld [vmem:[%s14 + $0x8] sm:$0xf]
    %v1535 = vld [vmem:[%s14 + $0xc] sm:$0xf]
    %v1536 = vld [vmem:[%s14 + $0x10] sm:$0xf]
    %v1537 = vld [vmem:[%s14 + $0x14] sm:$0xf]
    %v1538 = vld [vmem:[%s14 + $0x18] sm:$0xf]
    %v1539 = vld [vmem:[%s14 + $0x1c] sm:$0xf]
    %v1540 = vld [vmem:[%s14 + $0x20] sm:$0xf]
    %v1541 = vld [vmem:[%s14 + $0x24] sm:$0xf]
    %v1542 = vld [vmem:[%s14 + $0x28] sm:$0xf]
    %v1543 = vld [vmem:[%s14 + $0x2c] sm:$0xf]
    %v1544 = vld [vmem:[%s14 + $0x30] sm:$0xf]
    %v1545 = vld [vmem:[%s14 + $0x34] sm:$0xf]
    %v1546 = vld [vmem:[%s14 + $0x38] sm:$0xf]
    %v1547 = vld [vmem:[%s14 + $0x3c] sm:$0xf]
    %v1548 = vld [vmem:[%s15] sm:$0x1]
    %v1550 = vlaneseq
    %v1551 = vshrl.u32 %v1550, 7
    %v1552 = vsub.s32 0, %v1551
    %v1553 = vrot.slane %v1548, %v1552
    %v1571 = vunpack.c.l.b16 %v1532
    %v1572 = vunpack.c.l.b16 %v1533
    %v1573 = vunpack.c.l.b16 %v1534
    %v1574 = vunpack.c.l.b16 %v1535
    %v1575 = vunpack.c.l.b16 %v1536
    %v1576 = vunpack.c.l.b16 %v1537
    %v1577 = vunpack.c.l.b16 %v1538
    %v1578 = vunpack.c.l.b16 %v1539
    %v1579 = vunpack.c.l.b16 %v1540
    %v1580 = vunpack.c.l.b16 %v1541
    %v1581 = vunpack.c.l.b16 %v1542
    %v1582 = vunpack.c.l.b16 %v1543
    %v1583 = vunpack.c.l.b16 %v1544
    %v1584 = vunpack.c.l.b16 %v1545
    %v1585 = vunpack.c.l.b16 %v1546
    %v1586 = vunpack.c.l.b16 %v1547
    %v1587 = vpack.c.b16 %v1572, %v1571
    %v1588 = vpack.c.b16 %v1574, %v1573
    %v1589 = vpack.c.b16 %v1576, %v1575
    %v1590 = vpack.c.b16 %v1578, %v1577
    %v1591 = vpack.c.b16 %v1580, %v1579
    %v1592 = vpack.c.b16 %v1582, %v1581
    %v1593 = vpack.c.b16 %v1584, %v1583
    %v1594 = vpack.c.b16 %v1586, %v1585
    %1603 = vmatprep.subr.bf16.mxu0 0
    %1604 = vmatpush1.bf16.msra.mxu0 %v1587
    %1605 = vmatprep.subr.bf16.mxu0 0
    %1606 = vmatpush1.bf16.msra.mxu0 %v1588
    %1607 = vmatprep.subr.bf16.mxu0 0
    %1608 = vmatpush1.bf16.msra.mxu0 %v1589
    %1609 = vmatprep.subr.bf16.mxu0 0
    %1610 = vmatpush1.bf16.msra.mxu0 %v1590
    %1611 = vmatprep.subr.bf16.mxu0 0
    %1612 = vmatpush1.bf16.msra.mxu0 %v1591
    %1613 = vmatprep.subr.bf16.mxu0 0
    %1614 = vmatpush1.bf16.msra.mxu0 %v1592
    %1615 = vmatprep.subr.bf16.mxu0 0
    %1616 = vmatpush1.bf16.msra.mxu0 %v1593
    %1617 = vmatprep.subr.bf16.mxu0 0
    %1618 = vmatpush1.bf16.msra.mxu0 %v1594
    %1619 = vmatprep.subr.bf16.mxu0 0
    %1620 = vmatpush1.bf16.msra.mxu0 0
    %1621 = vmatprep.subr.bf16.mxu0 0
    %1622 = vmatpush1.bf16.msra.mxu0 0
    %1623 = vmatprep.subr.bf16.mxu0 0
    %1624 = vmatpush1.bf16.msra.mxu0 0
    %1625 = vmatprep.subr.bf16.mxu0 0
    %1626 = vmatpush1.bf16.msra.mxu0 0
    %1627 = vmatprep.subr.bf16.mxu0 0
    %1628 = vmatpush1.bf16.msra.mxu0 0
    %1629 = vmatprep.subr.bf16.mxu0 0
    %1630 = vmatpush1.bf16.msra.mxu0 0
    %1631 = vmatprep.subr.bf16.mxu0 0
    %1632 = vmatpush1.bf16.msra.mxu0 0
    %1633 = vmatprep.subr.bf16.mxu0 0
    %1634 = vmatpush1.bf16.msra.mxu0 0
    %1635 = vmatprep.mubr.bf16.mxu0 0
    %1636 = vmatmul.mubr.bf16.gmra.mrb[0].mxu0 %v1530
    %v1637 = vpop.f32.mrb[0].mxu0
    %v1638 = vadd.f32 %v1553, %v1637
    %v1639 = vpop.f32.mrb[0].mxu0
    %v1640 = vpop.f32.mrb[0].mxu0
    %v1641 = vadd.f32 %v1553, %v1640
    %v1642 = vpop.f32.mrb[0].mxu0
    %1643 = vmatprep.mubr.bf16.mxu0 0
    %1644 = vmatmul.mubr.bf16.gmra.mrb[0].mxu0 %v1531
    %v1645 = vpop.f32.mrb[0].mxu0
    %v1646 = vadd.f32 %v1553, %v1645
    %v1647 = vpop.f32.mrb[0].mxu0
    %v1648 = vpop.f32.mrb[0].mxu0
    %v1649 = vadd.f32 %v1553, %v1648
    %v1650 = vpop.f32.mrb[0].mxu0
    %1651 = vdwg.mxu0
    %v1652 = vadd.f32 %v1204, %v1638
    %v1653 = vadd.f32 %v1205, %v1641
    %v1654 = vadd.f32 %v1206, %v1646
    %v1655 = vadd.f32 %v1207, %v1649
    %1656 = vst.msk [vmem:[#allocation13] sm:$0xff] %vm139, %v1652
    %1657 = vst.msk [vmem:[#allocation13 + $0x8] sm:$0xff] %vm139, %v1653
    %1658 = vst.msk [vmem:[#allocation13 + $0x10] sm:$0xff] %vm139, %v1654
    %1659 = vst.msk [vmem:[#allocation13 + $0x18] sm:$0xff] %vm139, %v1655
    // Predicated region
    $region90: #{tpu_custom_call.1} parent=1 // pred_check
      _
    $region91: #{tpu_custom_call.1} parent=1 // pred_check_branch
      %1661 = sbr.rel (0) target = $region93
    $region92: #{tpu_custom_call.1} parent=1 // pred_region
      %s1663 = ssub.s32 512, 512
      %1664 = vsyncadd [#allocation4], %s1663
      %s1665 = sshll.u32 [#allocation13], 4
      %s1666 = int_to_ptr.vmem [resolvable:$true] %s1665
      %1671 = dma.vmem_to_hbm [thread:$0]  %s1666, 512, %s16, [#allocation4], 128, 128, 8
    $region93: #{tpu_custom_call.1} parent=1 // pred_fallthru
      _
    // Predicated region
    $region94: #{tpu_custom_call.1} parent=1 // pred_check
      _
    $region95: #{tpu_custom_call.1} parent=1 // pred_check_branch
      %1673 = sbr.rel (0) target = $region97
    $region96: #{tpu_custom_call.1} parent=1 // pred_region
      %1674 = dma.done [#allocation4], 512
    $region97: #{tpu_custom_call.1} parent=1 // pred_fallthru
      _
    %1675 = vsyncpa [#allocation3], 1
    %1676 = vsyncpa [#allocation6], 1
    %1677 = vsyncpa [#allocation9], 1
    %1678 = vsyncpa [#allocation12], 1
    %1679 = vsyncpa [#allocation4], 1

</llo_original>
